<compile_context>
chip_gen: v7x
topology: tpu7x:2x2x1
jax: 0.10.0
libtpu: 0.0.40
codegen_flags: <defaults>
</compile_context>

<pallas_src>
from functools import partial

import numpy as np
import jax
import jax.numpy as jnp
from jax.experimental import pallas as pl
from jax.experimental.pallas import tpu as pltpu

CIN, H, W = 4, 16, 16     # input channels / spatial size
COUT = 32                 # conv output channels
ZDIM = 64                 # encoder embedding dim
KH = KW = 3               # 3x3 conv, pad=1
HW = H * W
KCOL = KH * KW * CIN      # im2col feature dim (36) -- parameter layout only
WPC = (W + 2) * CIN       # 72: lanes of one padded image row (wp, c)
WCOUT = W * COUT          # 512: lanes of one conv row-group (w, cout)
LANE = 128

_VMEM_LIMIT = 32 * 1024 * 1024   # safe on v5e/v6e/v7x


def _choose_tile(n, cap):
    """(tile, padded_n): tile is a multiple of 8 <= cap; prefers >=2 (even) grid steps."""
    cap = max(8, (cap // 8) * 8)
    if n <= 8:
        return 8, 8
    if n <= 2 * cap:
        tile = min(cap, -(-n // 16) * 8)     # ~ceil(n/2) rounded up to 8 -> 2 steps
    else:
        tile = cap
    n_pad = -(-n // tile) * tile
    steps = n_pad // tile
    if steps > 2 and steps % 2:              # even step count for v7x's 2 TensorCores
        n_pad += tile
    return tile, n_pad


# ---------------------------------------------------------------------------
# Encoder kernel: TB images per grid step.
# rows of `conv` = (image, h); lanes = (w, cout)   -> everything stays 2-D and
# lane/sublane friendly; no in-kernel reshuffle of the patch data is needed.
# ---------------------------------------------------------------------------
def _encoder_kernel(xp_ref, wb_ref, bc_ref, afold_ref, wfb_ref, bf_ref, z_ref, *, tb):
    xp = xp_ref[...]                                          # (tb, H+2, WPC) bf16

    def tap(dh):                                              # one conv kernel-row
        x_dh = xp[:, dh:dh + H, :].reshape(tb * H, WPC)       # (tb*H, 72) bf16
        return jnp.dot(x_dh, wb_ref[dh],
                       preferred_element_type=jnp.float32)    # (tb*H, W*COUT) f32

    acc = tap(0) + tap(1) + tap(2)                            # conv pre-activation
    conv = jnp.maximum(acc + bc_ref[...], 0.0)                # bias + ReLU (f32)

    # mean over h via MXU segment-mean (afold has the 1/(H*W) factor); the
    # mean over w folds into the FC matmul (wf replicated per w).
    pooled = jnp.dot(afold_ref[...], conv,
                     preferred_element_type=jnp.float32)      # (tb, W*COUT) f32
    z_ref[...] = jnp.dot(pooled, wfb_ref[...],
                         preferred_element_type=jnp.float32) + bf_ref[...]  # (tb, 128)


def encoder_forward(x_nchw, params, tb_cap=32):
    """Synthetic encoder forward.  x_nchw: [N, CIN, H, W] float32 -> [N, ZDIM]."""
    wc, bc, wf, bf = params
    n = x_nchw.shape[0]
    tb, n_pad = _choose_tile(n, tb_cap)

    # ---- raw image prep (cheap, no 9x amplification): NCHW -> padded NHWC bf16,
    #      lanes = (wp, c).  Padded dummy images are all-zero and sliced off below.
    x = jnp.transpose(x_nchw, (0, 2, 3, 1)).astype(jnp.bfloat16)       # NHWC bf16
    xp = jnp.pad(x, ((0, n_pad - n), (1, 1), (1, 1), (0, 0)))
    xp = xp.reshape(n_pad, H + 2, WPC)                                 # (n_pad, 18, 72)

    # ---- banded conv weights: wb[dh, wp*CIN+c, w*COUT+co] = wc[dh,dw,c,co] for dw=wp-w
    wc4 = wc.reshape(KH, KW, CIN, COUT).astype(jnp.bfloat16)
    wp_minus_w = np.arange(W + 2)[:, None] - np.arange(W)[None, :]     # (18, 16)
    valid = (wp_minus_w >= 0) & (wp_minus_w < KW)
    dw_idx = np.clip(wp_minus_w, 0, KW - 1)
    wb = wc4[:, dw_idx, :, :]                                          # (3, 18, 16, 4, 32)
    wb = wb * jnp.asarray(valid, dtype=jnp.bfloat16)[None, :, :, None, None]
    wb = jnp.transpose(wb, (0, 1, 3, 2, 4)).reshape(KH, WPC, WCOUT)    # (3, 72, 512)

    bc_big = jnp.tile(bc.astype(jnp.float32), (1, W))                  # (1, W*COUT)

    # ---- MXU segment-mean matrix over (image, h) rows; carries the 1/(H*W) factor.
    afold = (np.arange(tb)[:, None] == (np.arange(tb * H)[None, :] // H))
    afold = jnp.asarray(afold, dtype=jnp.float32) / float(HW)          # (tb, tb*H)

    # ---- FC weight replicated per w (sums over w), output padded to 128 lanes.
    zpad = LANE - ZDIM
    wf_big = jnp.pad(jnp.tile(wf.astype(jnp.float32), (W, 1)), ((0, 0), (0, zpad)))
    bf_pad = jnp.pad(bf.astype(jnp.float32), ((0, 0), (0, zpad)))

    z = pl.pallas_call(
        partial(_encoder_kernel, tb=tb),
        out_shape=jax.ShapeDtypeStruct((n_pad, LANE), jnp.float32),
        grid_spec=pltpu.PrefetchScalarGridSpec(
            num_scalar_prefetch=0,
            grid=(n_pad // tb,),
            in_specs=[
                pl.BlockSpec((tb, H + 2, WPC), lambda i: (i, 0, 0)),   # image tile
                pl.BlockSpec((KH, WPC, WCOUT), lambda i: (0, 0, 0)),   # banded conv W
                pl.BlockSpec((1, WCOUT), lambda i: (0, 0)),            # conv bias
                pl.BlockSpec((tb, tb * H), lambda i: (0, 0)),          # mean fold
                pl.BlockSpec((WCOUT, LANE), lambda i: (0, 0)),         # FC weight
                pl.BlockSpec((1, LANE), lambda i: (0, 0)),             # FC bias
            ],
            out_specs=pl.BlockSpec((tb, LANE), lambda i: (i, 0)),
        ),
        compiler_params=pltpu.CompilerParams(
            dimension_semantics=("parallel",),
            vmem_limit_bytes=_VMEM_LIMIT),
    )(xp, wb, bc_big, afold, wf_big, bf_pad)
    return z[:n, :ZDIM]


# ---------------------------------------------------------------------------
# euclidean_dist(x, y, temperature) — dependent function of Protonet.
# dists[i, j] = (|x_i|^2 + |y_j|^2 - 2 x_i.y_j) / temperature on the MXU (f32,
# clamped at 0); prototypes resident, output lane-dense (padded to 128 cols).
# ---------------------------------------------------------------------------
def _euclid_kernel(x_ref, y_ref, ysq_ref, d_ref, *, inv_temperature):
    x = x_ref[...]                                            # (tn, d) f32
    xy = jax.lax.dot_general(x, y_ref[...], (((1,), (1,)), ((), ())),
                             preferred_element_type=jnp.float32)   # (tn, mp)
    xsq = jnp.sum(x * x, axis=1, keepdims=True)               # (tn, 1)
    d = jnp.maximum(xsq + ysq_ref[...] - 2.0 * xy, 0.0)       # clamp rounding
    d_ref[...] = d * inv_temperature


def euclidean_dist(x, y, temperature, row_tile=256):
    n, d = x.shape
    m, d2 = y.shape
    assert d == d2
    inv_t = 1.0 / float(temperature)

    x = x.astype(jnp.float32)
    y = y.astype(jnp.float32)
    tn, n_pad = _choose_tile(n, row_tile)
    if n_pad != n:
        x = jnp.pad(x, ((0, n_pad - n), (0, 0)))
    mp = max(LANE, -(-m // LANE) * LANE)                      # lane-dense output width
    y_p = jnp.pad(y, ((0, mp - m), (0, 0)))
    y_sq = jnp.sum(y_p * y_p, axis=1, keepdims=True).T        # (1, mp), tiny

    out = pl.pallas_call(
        partial(_euclid_kernel, inv_temperature=inv_t),
        out_shape=jax.ShapeDtypeStruct((n_pad, mp), jnp.float32),
        grid_spec=pltpu.PrefetchScalarGridSpec(
            num_scalar_prefetch=0,
            grid=(n_pad // tn,),
            in_specs=[
                pl.BlockSpec((tn, d), lambda i: (i, 0)),
                pl.BlockSpec((mp, d), lambda i: (0, 0)),      # prototypes resident
                pl.BlockSpec((1, mp), lambda i: (0, 0)),
            ],
            out_specs=pl.BlockSpec((tn, mp), lambda i: (i, 0)),
        ),
        compiler_params=pltpu.CompilerParams(
            dimension_semantics=("parallel",),
            vmem_limit_bytes=_VMEM_LIMIT),
    )(x, y_p, y_sq)
    return out[:n, :m]


class Protonet:
    """Matches the PyTorch module: forward(x) = encoder.forward(x)."""

    def __init__(self, encoder_params):
        self.params = encoder_params

    def forward(self, sample_inputs):
        return encoder_forward(sample_inputs, self.params)


# ---------------------------------------------------------------------------
# test / demo
# ---------------------------------------------------------------------------
def _im2col_np(x_nhwc_f64):
    """float64 numpy im2col (3x3, pad=1), reference only."""
    n = x_nhwc_f64.shape[0]
    xp = np.pad(x_nhwc_f64, ((0, 0), (1, 1), (1, 1), (0, 0)))
    patches = [xp[:, dh:dh + H, dw:dw + W, :] for dh in range(KH) for dw in range(KW)]
    cols = np.concatenate(patches, axis=-1)
    return cols.reshape(n * HW, KCOL)


if __name__ == "__main__":
    key = jax.random.PRNGKey(0)
    k0, k1, k2, k3, k4 = jax.random.split(key, 5)

    # Deterministic synthetic encoder parameters.
    wc = jax.random.normal(k0, (KCOL, COUT), jnp.float32) * 0.1
    bc = jax.random.normal(k1, (1, COUT), jnp.float32) * 0.1
    wf = jax.random.normal(k2, (COUT, ZDIM), jnp.float32) * 0.1
    bf = jax.random.normal(k3, (1, ZDIM), jnp.float32) * 0.1
    params = (wc, bc, wf, bf)

    # Protonet-style batch: n_class * (n_xs + n_xq) images, NCHW.
    n_class, n_per_class = 2, 8
    N = n_class * n_per_class                                 # 16 -> tile 8, 2 grid steps
    x = jax.random.normal(k4, (N, CIN, H, W), jnp.float32)

    net = Protonet(params)
    z = jax.block_until_ready(net.forward(x))                 # [N, ZDIM]

    # ---- float64 numpy reference with identical bf16 quantization of image/conv W.
    xq = np.asarray(x.astype(jnp.bfloat16).astype(jnp.float32), np.float64)
    wcq = np.asarray(wc.astype(jnp.bfloat16).astype(jnp.float32), np.float64)
    bc_np = np.asarray(bc, np.float64)
    wf_np = np.asarray(wf, np.float64)
    bf_np = np.asarray(bf, np.float64)

    cols = _im2col_np(np.transpose(xq, (0, 2, 3, 1)))
    conv_ref = np.maximum(cols @ wcq + bc_np, 0.0)            # [N*HW, COUT]
    feat_ref = conv_ref.reshape(N, HW, COUT).mean(axis=1)     # [N, COUT]
    z_ref = feat_ref @ wf_np + bf_np                          # [N, ZDIM]
    assert np.allclose(np.asarray(z, np.float64), z_ref, atol=1e-3, rtol=1e-3)

    # ---- euclidean_dist kernel check (used by validate_protos / loss_oriproto).
    temperature = 10.0
    protos = jnp.asarray(z_ref[:n_class], jnp.float32)        # [n_class, ZDIM]
    dists = jax.block_until_ready(euclidean_dist(z, protos, temperature))
    z_np = np.asarray(z, np.float64)
    p_np = z_ref[:n_class]
    d_ref = ((z_np[:, None, :] - p_np[None, :, :]) ** 2).sum(-1) / temperature
    assert np.allclose(np.asarray(dists, np.float64), d_ref, atol=1e-3, rtol=1e-3)

    print("KERNEL_OK")
</pallas_src>

<mosaic_0001>
module attributes {stable_mosaic.version = 11 : i64} {
  func.func @_encoder_kernel(%arg0: i32, %arg1: memref<8x18x72xbf16, #tpu.memory_space<vmem>>, %arg2: memref<3x72x512xbf16, #tpu.memory_space<vmem>>, %arg3: memref<1x512xf32, #tpu.memory_space<vmem>>, %arg4: memref<8x128xf32, #tpu.memory_space<vmem>>, %arg5: memref<512x128xf32, #tpu.memory_space<vmem>>, %arg6: memref<1x128xf32, #tpu.memory_space<vmem>>, %arg7: memref<8x128xf32, #tpu.memory_space<vmem>>) attributes {dimension_semantics = [#tpu.dimension_semantics<parallel>], iteration_bounds = array<i64: 2>, scalar_prefetch = 0 : i64, scratch_operands = 0 : i64, tpu.core_type = #tpu.core_type<tc>, window_params = [{transform_indices = @transform_0, window_bounds = array<i64: 8, 18, 72>}, {pipeline_mode = #tpu.pipeline_mode<synchronous>, transform_indices = @transform_1, window_bounds = array<i64: 3, 72, 512>}, {pipeline_mode = #tpu.pipeline_mode<synchronous>, transform_indices = @transform_2, window_bounds = array<i64: 1, 512>}, {pipeline_mode = #tpu.pipeline_mode<synchronous>, transform_indices = @transform_3, window_bounds = array<i64: 8, 128>}, {pipeline_mode = #tpu.pipeline_mode<synchronous>, transform_indices = @transform_4, window_bounds = array<i64: 512, 128>}, {pipeline_mode = #tpu.pipeline_mode<synchronous>, transform_indices = @transform_5, window_bounds = array<i64: 1, 128>}, {transform_indices = @transform_6, window_bounds = array<i64: 8, 128>}]} {
    %c0 = arith.constant 0 : index
    %c0_0 = arith.constant 0 : index
    %c0_1 = arith.constant 0 : index
    %0 = vector.load %arg1[%c0, %c0_0, %c0_1] : memref<8x18x72xbf16, #tpu.memory_space<vmem>>, vector<8x18x72xbf16>
    %1 = vector.extract_strided_slice %0 {offsets = [0, 0, 0], sizes = [8, 16, 72], strides = [1, 1, 1]} : vector<8x18x72xbf16> to vector<8x16x72xbf16>
    %2 = vector.shape_cast %1 : vector<8x16x72xbf16> to vector<128x72xbf16>
    %c0_2 = arith.constant 0 : index
    %c0_3 = arith.constant 0 : index
    %c0_4 = arith.constant 0 : index
    %3 = vector.load %arg2[%c0_2, %c0_3, %c0_4] : memref<3x72x512xbf16, #tpu.memory_space<vmem>>, vector<1x72x512xbf16>
    %4 = vector.shape_cast %3 : vector<1x72x512xbf16> to vector<72x512xbf16>
    %cst = arith.constant dense<0.000000e+00> : vector<128x512xf32>
    %5 = tpu.matmul %2, %4, %cst {dimension_numbers = #tpu.dot_dimension_numbers<[1], [0], [0], [1], [0, 0, 1, 1], [], []>} : vector<128x72xbf16>, vector<72x512xbf16>, vector<128x512xf32> -> vector<128x512xf32>
    %6 = vector.extract_strided_slice %0 {offsets = [0, 1, 0], sizes = [8, 16, 72], strides = [1, 1, 1]} : vector<8x18x72xbf16> to vector<8x16x72xbf16>
    %7 = vector.shape_cast %6 : vector<8x16x72xbf16> to vector<128x72xbf16>
    %c1 = arith.constant 1 : index
    %c0_5 = arith.constant 0 : index
    %c0_6 = arith.constant 0 : index
    %8 = vector.load %arg2[%c1, %c0_5, %c0_6] : memref<3x72x512xbf16, #tpu.memory_space<vmem>>, vector<1x72x512xbf16>
    %9 = vector.shape_cast %8 : vector<1x72x512xbf16> to vector<72x512xbf16>
    %cst_7 = arith.constant dense<0.000000e+00> : vector<128x512xf32>
    %10 = tpu.matmul %7, %9, %cst_7 {dimension_numbers = #tpu.dot_dimension_numbers<[1], [0], [0], [1], [0, 0, 1, 1], [], []>} : vector<128x72xbf16>, vector<72x512xbf16>, vector<128x512xf32> -> vector<128x512xf32>
    %11 = arith.addf %5, %10 : vector<128x512xf32>
    %12 = vector.extract_strided_slice %0 {offsets = [0, 2, 0], sizes = [8, 16, 72], strides = [1, 1, 1]} : vector<8x18x72xbf16> to vector<8x16x72xbf16>
    %13 = vector.shape_cast %12 : vector<8x16x72xbf16> to vector<128x72xbf16>
    %c2 = arith.constant 2 : index
    %c0_8 = arith.constant 0 : index
    %c0_9 = arith.constant 0 : index
    %14 = vector.load %arg2[%c2, %c0_8, %c0_9] : memref<3x72x512xbf16, #tpu.memory_space<vmem>>, vector<1x72x512xbf16>
    %15 = vector.shape_cast %14 : vector<1x72x512xbf16> to vector<72x512xbf16>
    %cst_10 = arith.constant dense<0.000000e+00> : vector<128x512xf32>
    %16 = tpu.matmul %13, %15, %cst_10 {dimension_numbers = #tpu.dot_dimension_numbers<[1], [0], [0], [1], [0, 0, 1, 1], [], []>} : vector<128x72xbf16>, vector<72x512xbf16>, vector<128x512xf32> -> vector<128x512xf32>
    %17 = arith.addf %11, %16 : vector<128x512xf32>
    %c0_11 = arith.constant 0 : index
    %c0_12 = arith.constant 0 : index
    %18 = vector.load %arg3[%c0_11, %c0_12] : memref<1x512xf32, #tpu.memory_space<vmem>>, vector<1x512xf32>
    %19 = vector.broadcast %18 : vector<1x512xf32> to vector<128x512xf32>
    %20 = arith.addf %17, %19 : vector<128x512xf32>
    %cst_13 = arith.constant 0.000000e+00 : f32
    %21 = vector.broadcast %cst_13 : f32 to vector<128x512xf32>
    %22 = arith.maximumf %20, %21 : vector<128x512xf32>
    %c0_14 = arith.constant 0 : index
    %c0_15 = arith.constant 0 : index
    %23 = vector.load %arg4[%c0_14, %c0_15] : memref<8x128xf32, #tpu.memory_space<vmem>>, vector<8x128xf32>
    %cst_16 = arith.constant dense<0.000000e+00> : vector<8x512xf32>
    %24 = tpu.matmul %23, %22, %cst_16 {dimension_numbers = #tpu.dot_dimension_numbers<[1], [0], [0], [1], [0, 0, 1, 1], [], []>} : vector<8x128xf32>, vector<128x512xf32>, vector<8x512xf32> -> vector<8x512xf32>
    %c0_17 = arith.constant 0 : index
    %c0_18 = arith.constant 0 : index
    %25 = vector.load %arg5[%c0_17, %c0_18] : memref<512x128xf32, #tpu.memory_space<vmem>>, vector<512x128xf32>
    %cst_19 = arith.constant dense<0.000000e+00> : vector<8x128xf32>
    %26 = tpu.matmul %24, %25, %cst_19 {dimension_numbers = #tpu.dot_dimension_numbers<[1], [0], [0], [1], [0, 0, 1, 1], [], []>} : vector<8x512xf32>, vector<512x128xf32>, vector<8x128xf32> -> vector<8x128xf32>
    %c0_20 = arith.constant 0 : index
    %c0_21 = arith.constant 0 : index
    %27 = vector.load %arg6[%c0_20, %c0_21] : memref<1x128xf32, #tpu.memory_space<vmem>>, vector<1x128xf32>
    %28 = vector.broadcast %27 : vector<1x128xf32> to vector<8x128xf32>
    %29 = arith.addf %26, %28 : vector<8x128xf32>
    %c0_22 = arith.constant 0 : index
    %c0_23 = arith.constant 0 : index
    %30 = vector.load %arg7[%c0_22, %c0_23] : memref<8x128xf32, #tpu.memory_space<vmem>>, vector<8x128xf32>
    tpu.vector_store %arg7[%c0_22, %c0_23], %29 {strides = array<i32>} : memref<8x128xf32, #tpu.memory_space<vmem>>, vector<8x128xf32>,
    return
  }
  func.func @transform_0(%arg0: i32) -> (i32, i32, i32) {
    %c0_i32 = arith.constant 0 : i32
    %c0_i32_0 = arith.constant 0 : i32
    %c0_i32_1 = arith.constant 0 : i32
    return %arg0, %c0_i32, %c0_i32_0 : i32, i32, i32
  }
  func.func @transform_1(%arg0: i32) -> (i32, i32, i32) {
    %c0_i32 = arith.constant 0 : i32
    %c0_i32_0 = arith.constant 0 : i32
    %c0_i32_1 = arith.constant 0 : i32
    %c0_i32_2 = arith.constant 0 : i32
    return %c0_i32, %c0_i32_0, %c0_i32_1 : i32, i32, i32
  }
  func.func @transform_2(%arg0: i32) -> (i32, i32) {
    %c0_i32 = arith.constant 0 : i32
    %c0_i32_0 = arith.constant 0 : i32
    %c0_i32_1 = arith.constant 0 : i32
    return %c0_i32, %c0_i32_0 : i32, i32
  }
  func.func @transform_3(%arg0: i32) -> (i32, i32) {
    %c0_i32 = arith.constant 0 : i32
    %c0_i32_0 = arith.constant 0 : i32
    %c0_i32_1 = arith.constant 0 : i32
    return %c0_i32, %c0_i32_0 : i32, i32
  }
  func.func @transform_4(%arg0: i32) -> (i32, i32) {
    %c0_i32 = arith.constant 0 : i32
    %c0_i32_0 = arith.constant 0 : i32
    %c0_i32_1 = arith.constant 0 : i32
    return %c0_i32, %c0_i32_0 : i32, i32
  }
  func.func @transform_5(%arg0: i32) -> (i32, i32) {
    %c0_i32 = arith.constant 0 : i32
    %c0_i32_0 = arith.constant 0 : i32
    %c0_i32_1 = arith.constant 0 : i32
    return %c0_i32, %c0_i32_0 : i32, i32
  }
  func.func @transform_6(%arg0: i32) -> (i32, i32) {
    %c0_i32 = arith.constant 0 : i32
    %c0_i32_0 = arith.constant 0 : i32
    return %arg0, %c0_i32 : i32, i32
  }
}

</mosaic_0001>

<llo_original>
// kernel: tpu_custom_call.1
$region0: #{tpu_custom_call.1}
  #allocation0 [shape = 'u32[]', space=smem, size = 0x4, offset = 0x4, fixed_abs, tag = 'smem constant byte address 0x4 - core index']
  #allocation1 [shape = 'u32[144,128]{1,0:T(1,128)}', space=vmem, size = 0x12000, scoped, tag = 'internal scratch']
  %s0 = inlined_call_operand.vmem [shape: bf16[16,18,72], index: 0, kind: input, shape index: {}]
  %s1 = inlined_call_operand.hbm [shape: bf16[3,72,512], index: 1, kind: input, shape index: {}]
  %s2 = inlined_call_operand.vmem [shape: f32[1,512], index: 2, kind: input, shape index: {}]
  %s3 = inlined_call_operand.vmem [shape: f32[8,128], index: 3, kind: input, shape index: {}]
  %s4 = inlined_call_operand.hbm [shape: f32[512,128], index: 4, kind: input, shape index: {}]
  %s5 = inlined_call_operand.vmem [shape: f32[1,128], index: 5, kind: input, shape index: {}]
  %s6 = inlined_call_operand.hbm [shape: f32[16,128], index: 6, kind: output, shape index: {}]
  %s7 = sld [smem:[#allocation0]]
  $region65: #{tpu_custom_call.1} parent=0
    _
  %s9 = ssub.s32 1, %s7
  %s10 = scalar_select 0, %s9, %s7
  $region1: #{tpu_custom_call.1} parent=0
    #allocation2 [shape = 'u8[221184]{0}', space=vmem, size = 0x36000, scoped, tag = 'input window, operand 1, single buffered']
    #allocation3 [shape = 's32[2]{0}', space=sflag, size = 0x8, scoped, tag = 'scoped memory for tpu_custom_call.1']
    #allocation4 [shape = 's32[2]{0}', space=sflag, size = 0x8, scoped, tag = 'scoped memory for tpu_custom_call.1']
    #allocation5 [shape = 'u8[262144]{0}', space=vmem, size = 0x40000, scoped, tag = 'input window, operand 4, single buffered']
    #allocation6 [shape = 's32[1]{0}', space=sflag, size = 0x4, scoped, tag = 'scoped memory for tpu_custom_call.1']
    #allocation7 [shape = 'u8[8192]{0}', space=vmem, size = 0x2000, scoped, tag = 'output window, operand 0']
    %11 = vsyncpa [#allocation3], 0
    %12 = vsyncpa [#allocation6], 0
    %13 = vsyncpa [#allocation4], 0
    %s14 = scalar_lea.sflag [#allocation4], 1
    %15 = vsyncpa %s14, 0
    loop: start=0, step=1, limit=4
    $region2: #{tpu_custom_call.1} parent=1 // loop_pre_header
      _
    $region3: #{tpu_custom_call.1} parent=1 // loop_header
      %s17 = sphi 0, %s21
      %p18 = scmp.ge.s32.totalorder %s17, 4
      %s27 = sphi 0, %s29
      %s30 = sphi 0, %s27
      %s31 = sphi 0, %s30
      %s47 = sphi 0, %s31
      %s51 = sphi 0, %s51
      %s53 = sphi 0, %s51
      %s54 = sphi 0, %s53
      %s68 = sphi 0, %s54
      %s72 = sphi 0, %s72
      %s74 = sphi 0, %s72
      %s75 = sphi 0, %s74
      %s89 = sphi 0, %s75
      %s93 = sphi 0, %s93
      %s95 = sphi 0, %s93
      %s96 = sphi 0, %s95
      %s110 = sphi 0, %s96
      %s114 = sphi 0, %s114
      %s116 = sphi 0, %s114
      %s117 = sphi 0, %s116
      %s131 = sphi 0, %s117
      %s135 = sphi 0, %s135
      %s137 = sphi 0, %s135
      %s138 = sphi 0, %s137
      %s152 = sphi 0, %s138
      %s158 = sphi 0, %s160
      %s161 = sphi 0, %s158
      %s162 = sphi 0, %s161
      %s178 = sphi 0, %s162
    $region4: #{tpu_custom_call.1} parent=1 // loop_header_branch
      %20 = sbr.rel (%p18) target = $region8
    $region5: #{tpu_custom_call.1} parent=1 // loop_body
      %s22 = ssub.s32 %s17, 1
      %s23 = ssub.s32 %s17, 2
      %s24 = sadd.s32 %s17, 1
      %s25 = ssub.s32 %s17, %s24
      %p26 = scmp.eq.s32.totalorder %s25, 0
      %s28 = sadd.s32 %s27, 1
      %s29 = scalar_select %p26, %s27, %s28
      %p32 = pneg %p26
      %p33 = scmp.eq.s32.totalorder %s17, 1
      %p34 = por %p32, %p33
      %p35 = scmp.ne.s32.totalorder %s27, %s30
      %p36 = scmp.eq.s32.totalorder %s17, 0
      %p37 = por %p35, %p36
      %p38 = scmp.ne.s32.totalorder %s27, %s30
      %p39 = scmp.eq.s32.totalorder %s22, 1
      %p40 = por %p38, %p39
      %p41 = scmp.ne.s32.totalorder %s30, %s31
      %p42 = scmp.eq.s32.totalorder %s22, 0
      %p43 = por %p41, %p42
      %p44 = scmp.ne.s32.totalorder %s30, %s31
      %p45 = scmp.eq.s32.totalorder %s23, 1
      %p46 = por %p44, %p45
      %p48 = scmp.ne.s32.totalorder %s31, %s47
      %p49 = scmp.eq.s32.totalorder %s23, 0
      %p50 = por %p48, %p49
      %s52 = sadd.s32 %s51, 1
      %p55 = scmp.eq.s32.totalorder %s17, 1
      %p56 = scmp.ne.s32.totalorder %s51, %s53
      %p57 = scmp.eq.s32.totalorder %s17, 0
      %p58 = por %p56, %p57
      %p59 = scmp.ne.s32.totalorder %s51, %s53
      %p60 = scmp.eq.s32.totalorder %s22, 1
      %p61 = por %p59, %p60
      %p62 = scmp.ne.s32.totalorder %s53, %s54
      %p63 = scmp.eq.s32.totalorder %s22, 0
      %p64 = por %p62, %p63
      %p65 = scmp.ne.s32.totalorder %s53, %s54
      %p66 = scmp.eq.s32.totalorder %s23, 1
      %p67 = por %p65, %p66
      %p69 = scmp.ne.s32.totalorder %s54, %s68
      %p70 = scmp.eq.s32.totalorder %s23, 0
      %p71 = por %p69, %p70
      %s73 = sadd.s32 %s72, 1
      %p76 = scmp.eq.s32.totalorder %s17, 1
      %p77 = scmp.ne.s32.totalorder %s72, %s74
      %p78 = scmp.eq.s32.totalorder %s17, 0
      %p79 = por %p77, %p78
      %p80 = scmp.ne.s32.totalorder %s72, %s74
      %p81 = scmp.eq.s32.totalorder %s22, 1
      %p82 = por %p80, %p81
      %p83 = scmp.ne.s32.totalorder %s74, %s75
      %p84 = scmp.eq.s32.totalorder %s22, 0
      %p85 = por %p83, %p84
      %p86 = scmp.ne.s32.totalorder %s74, %s75
      %p87 = scmp.eq.s32.totalorder %s23, 1
      %p88 = por %p86, %p87
      %p90 = scmp.ne.s32.totalorder %s75, %s89
      %p91 = scmp.eq.s32.totalorder %s23, 0
      %p92 = por %p90, %p91
      %s94 = sadd.s32 %s93, 1
      %p97 = scmp.eq.s32.totalorder %s17, 1
      %p98 = scmp.ne.s32.totalorder %s93, %s95
      %p99 = scmp.eq.s32.totalorder %s17, 0
      %p100 = por %p98, %p99
      %p101 = scmp.ne.s32.totalorder %s93, %s95
      %p102 = scmp.eq.s32.totalorder %s22, 1
      %p103 = por %p101, %p102
      %p104 = scmp.ne.s32.totalorder %s95, %s96
      %p105 = scmp.eq.s32.totalorder %s22, 0
      %p106 = por %p104, %p105
      %p107 = scmp.ne.s32.totalorder %s95, %s96
      %p108 = scmp.eq.s32.totalorder %s23, 1
      %p109 = por %p107, %p108
      %p111 = scmp.ne.s32.totalorder %s96, %s110
      %p112 = scmp.eq.s32.totalorder %s23, 0
      %p113 = por %p111, %p112
      %s115 = sadd.s32 %s114, 1
      %p118 = scmp.eq.s32.totalorder %s17, 1
      %p119 = scmp.ne.s32.totalorder %s114, %s116
      %p120 = scmp.eq.s32.totalorder %s17, 0
      %p121 = por %p119, %p120
      %p122 = scmp.ne.s32.totalorder %s114, %s116
      %p123 = scmp.eq.s32.totalorder %s22, 1
      %p124 = por %p122, %p123
      %p125 = scmp.ne.s32.totalorder %s116, %s117
      %p126 = scmp.eq.s32.totalorder %s22, 0
      %p127 = por %p125, %p126
      %p128 = scmp.ne.s32.totalorder %s116, %s117
      %p129 = scmp.eq.s32.totalorder %s23, 1
      %p130 = por %p128, %p129
      %p132 = scmp.ne.s32.totalorder %s117, %s131
      %p133 = scmp.eq.s32.totalorder %s23, 0
      %p134 = por %p132, %p133
      %s136 = sadd.s32 %s135, 1
      %p139 = scmp.eq.s32.totalorder %s17, 1
      %p140 = scmp.ne.s32.totalorder %s135, %s137
      %p141 = scmp.eq.s32.totalorder %s17, 0
      %p142 = por %p140, %p141
      %p143 = scmp.ne.s32.totalorder %s135, %s137
      %p144 = scmp.eq.s32.totalorder %s22, 1
      %p145 = por %p143, %p144
      %p146 = scmp.ne.s32.totalorder %s137, %s138
      %p147 = scmp.eq.s32.totalorder %s22, 0
      %p148 = por %p146, %p147
      %p149 = scmp.ne.s32.totalorder %s137, %s138
      %p150 = scmp.eq.s32.totalorder %s23, 1
      %p151 = por %p149, %p150
      %p153 = scmp.ne.s32.totalorder %s138, %s152
      %p154 = scmp.eq.s32.totalorder %s23, 0
      %p155 = por %p153, %p154
      %s156 = ssub.s32 %s17, %s24
      %p157 = scmp.eq.s32.totalorder %s156, 0
      %s159 = sadd.s32 %s158, 1
      %s160 = scalar_select %p157, %s158, %s159
      %p163 = pneg %p157
      %p164 = scmp.eq.s32.totalorder %s17, 1
      %p165 = por %p163, %p164
      %p166 = scmp.ne.s32.totalorder %s158, %s161
      %p167 = scmp.eq.s32.totalorder %s17, 0
      %p168 = por %p166, %p167
      %p169 = scmp.ne.s32.totalorder %s158, %s161
      %p170 = scmp.eq.s32.totalorder %s22, 1
      %p171 = por %p169, %p170
      %p172 = scmp.ne.s32.totalorder %s161, %s162
      %p173 = scmp.eq.s32.totalorder %s22, 0
      %p174 = por %p172, %p173
      %p175 = scmp.ne.s32.totalorder %s161, %s162
      %p176 = scmp.eq.s32.totalorder %s23, 1
      %p177 = por %p175, %p176
      %p179 = scmp.ne.s32.totalorder %s162, %s178
      %p180 = scmp.eq.s32.totalorder %s23, 0
      %p181 = por %p179, %p180
      %p182 = scmp.le.s32.totalorder 1, %s17
      %p183 = scmp.lt.s32.totalorder %s17, 3
      %p184 = pnand %p182, %p183
      %p185 = pneg %p184
      // Predicated region
      $region9: #{tpu_custom_call.1} parent=5 // pred_check
        _
      $region10: #{tpu_custom_call.1} parent=5 // pred_check_branch
        %187 = sbr.rel (%p184) target = $region12
      $region11: #{tpu_custom_call.1} parent=5 // pred_region
        %s188 = ssub.s32 %s17, 1
        // Predicated region
        $region13: #{tpu_custom_call.1} parent=11 // pred_check
          %p189 = pneg %p64
        $region14: #{tpu_custom_call.1} parent=11 // pred_check_branch
          %191 = sbr.rel (%p189) target = $region16
        $region15: #{tpu_custom_call.1} parent=11 // pred_region
          %s193 = ssub.s32 6912, 6912
          %194 = vsyncadd [#allocation3], %s193
          %s195 = sshll.u32 [#allocation2], 4
          %s196 = int_to_ptr.vmem [resolvable:$true] %s195
          %201 = dma.hbm_to_vmem [thread:$0]  %s1, 6912, %s196, [#allocation3], 256, 256, 16
        $region16: #{tpu_custom_call.1} parent=11 // pred_fallthru
          _
        // Predicated region
        $region17: #{tpu_custom_call.1} parent=11 // pred_check
          %p202 = pneg %p85
        $region18: #{tpu_custom_call.1} parent=11 // pred_check_branch
          %204 = sbr.rel (%p202) target = $region20
        $region19: #{tpu_custom_call.1} parent=11 // pred_region
          _
        $region20: #{tpu_custom_call.1} parent=11 // pred_fallthru
          _
        // Predicated region
        $region21: #{tpu_custom_call.1} parent=11 // pred_check
          %p205 = pneg %p106
        $region22: #{tpu_custom_call.1} parent=11 // pred_check_branch
          %207 = sbr.rel (%p205) target = $region24
        $region23: #{tpu_custom_call.1} parent=11 // pred_region
          _
        $region24: #{tpu_custom_call.1} parent=11 // pred_fallthru
          _
        // Predicated region
        $region25: #{tpu_custom_call.1} parent=11 // pred_check
          %p208 = pneg %p127
        $region26: #{tpu_custom_call.1} parent=11 // pred_check_branch
          %210 = sbr.rel (%p208) target = $region28
        $region27: #{tpu_custom_call.1} parent=11 // pred_region
          %s212 = ssub.s32 8192, 8192
          %213 = vsyncadd [#allocation6], %s212
          %s214 = sshll.u32 [#allocation5], 4
          %s215 = int_to_ptr.vmem [resolvable:$true] %s214
          %220 = dma.hbm_to_vmem [thread:$0]  %s4, 8192, %s215, [#allocation6], 128, 128, 8
        $region28: #{tpu_custom_call.1} parent=11 // pred_fallthru
          _
        // Predicated region
        $region29: #{tpu_custom_call.1} parent=11 // pred_check
          %p221 = pneg %p148
        $region30: #{tpu_custom_call.1} parent=11 // pred_check_branch
          %223 = sbr.rel (%p221) target = $region32
        $region31: #{tpu_custom_call.1} parent=11 // pred_region
          _
        $region32: #{tpu_custom_call.1} parent=11 // pred_fallthru
          _
      $region12: #{tpu_custom_call.1} parent=5 // pred_fallthru
        _
      %p224 = scmp.lt.s32.totalorder %s17, 2
      // Predicated region
      $region33: #{tpu_custom_call.1} parent=5 // pred_check
        %p225 = pneg %p224
      $region34: #{tpu_custom_call.1} parent=5 // pred_check_branch
        %227 = sbr.rel (%p225) target = $region36
      $region35: #{tpu_custom_call.1} parent=5 // pred_region
        // Predicated region
        $region37: #{tpu_custom_call.1} parent=35 // pred_check
          %p228 = pneg %p37
        $region38: #{tpu_custom_call.1} parent=35 // pred_check_branch
          %230 = sbr.rel (%p228) target = $region40
        $region39: #{tpu_custom_call.1} parent=35 // pred_region
          %s231 = smul.u32 8, %s17
          %p232 = scmp.lt.s32.totalorder %s231, 15
          %s233 = scalar_select %p232, %s231, 15
          %s234 = smul.addr %s233, 3
          %s235 = smul.addr %s234, 4
          %s236 = scalar_lea.vmem %s0, %s235
          %s237 = smul.u32 8, %s17
        $region40: #{tpu_custom_call.1} parent=35 // pred_fallthru
          _
      $region36: #{tpu_custom_call.1} parent=5 // pred_fallthru
        _
      %p238 = scmp.le.s32.totalorder 1, %s17
      %p239 = scmp.lt.s32.totalorder %s17, 3
      %p240 = pnand %p238, %p239
      %p241 = pneg %p240
      // Predicated region
      $region41: #{tpu_custom_call.1} parent=5 // pred_check
        _
      $region42: #{tpu_custom_call.1} parent=5 // pred_check_branch
        %243 = sbr.rel (%p240) target = $region44
      $region43: #{tpu_custom_call.1} parent=5 // pred_region
        %s244 = ssub.s32 %s17, 1
        // Predicated region
        $region45: #{tpu_custom_call.1} parent=43 // pred_check
          %p245 = pneg %p64
        $region46: #{tpu_custom_call.1} parent=43 // pred_check_branch
          %247 = sbr.rel (%p245) target = $region48
        $region47: #{tpu_custom_call.1} parent=43 // pred_region
          %248 = dma.done [#allocation3], 6912
        $region48: #{tpu_custom_call.1} parent=43 // pred_fallthru
          _
        // Predicated region
        $region49: #{tpu_custom_call.1} parent=43 // pred_check
          %p249 = pneg %p127
        $region50: #{tpu_custom_call.1} parent=43 // pred_check_branch
          %251 = sbr.rel (%p249) target = $region52
        $region51: #{tpu_custom_call.1} parent=43 // pred_region
          %252 = dma.done [#allocation6], 8192
        $region52: #{tpu_custom_call.1} parent=43 // pred_fallthru
          _
        %s253 = smul.u32 8, %s22
        %p254 = scmp.lt.s32.totalorder %s253, 15
        %s255 = scalar_select %p254, %s253, 15
        %s256 = smul.addr %s255, 3
        %s257 = smul.addr %s256, 4
        %s258 = scalar_lea.vmem %s0, %s257
        %p259 = pneg %p43
        %p260 = pneg %p40
        %p261 = pneg %p64
        %p262 = pneg %p61
        %p263 = pneg %p85
        %p264 = pneg %p82
        %p265 = pneg %p106
        %p266 = pneg %p103
        %p267 = pneg %p127
        %p268 = pneg %p124
        %p269 = pneg %p148
        %p270 = pneg %p145
        %p271 = pneg %p174
        %p272 = pneg %p171
        %s273 = sand.u32 %s161, 1
        %s274 = scalar_lea.sflag [#allocation4], %s273
        %s275 = sand.u32 %s161, 1
        %s276 = smul.addr %s275, 8
        %s277 = scalar_lea.vmem [#allocation7], %s276
        %s278 = smul.u32 8, %s22
        %p279 = scmp.lt.s32.totalorder %s278, 15
        %s280 = scalar_select %p279, %s278, 15
        %s281 = smul.addr %s280, 3
        %s282 = smul.addr %s281, 4
        %s283 = scalar_lea.vmem %s0, %s282
        %s284 = smul.u32 8, %s22
        %v286 = vld [vmem:[%s283] sm:$0xf]
        %v287 = vld [vmem:[%s283 + $0x4] sm:$0xf]
        %v288 = vld [vmem:[%s283 + $0x8] sm:$0x1]
        %v289 = vld [vmem:[%s283 + $0xc] sm:$0xf]
        %v290 = vld [vmem:[%s283 + $0x10] sm:$0xf]
        %v291 = vld [vmem:[%s283 + $0x14] sm:$0x1]
        %v292 = vld [vmem:[%s283 + $0x18] sm:$0xf]
        %v293 = vld [vmem:[%s283 + $0x1c] sm:$0xf]
        %v294 = vld [vmem:[%s283 + $0x20] sm:$0x1]
        %v295 = vld [vmem:[%s283 + $0x24] sm:$0xf]
        %v296 = vld [vmem:[%s283 + $0x28] sm:$0xf]
        %v297 = vld [vmem:[%s283 + $0x2c] sm:$0x1]
        %v298 = vld [vmem:[%s283 + $0x30] sm:$0xf]
        %v299 = vld [vmem:[%s283 + $0x34] sm:$0xf]
        %v300 = vld [vmem:[%s283 + $0x38] sm:$0x1]
        %v301 = vld [vmem:[%s283 + $0x3c] sm:$0xf]
        %v302 = vld [vmem:[%s283 + $0x40] sm:$0xf]
        %v303 = vld [vmem:[%s283 + $0x44] sm:$0x1]
        %v304 = vld [vmem:[%s283 + $0x48] sm:$0xf]
        %v305 = vld [vmem:[%s283 + $0x4c] sm:$0xf]
        %v306 = vld [vmem:[%s283 + $0x50] sm:$0x1]
        %v307 = vld [vmem:[%s283 + $0x54] sm:$0xf]
        %v308 = vld [vmem:[%s283 + $0x58] sm:$0xf]
        %v309 = vld [vmem:[%s283 + $0x5c] sm:$0x1]
        %v310 = vld [vmem:[#allocation2] sm:$0xff]
        %v311 = vld [vmem:[#allocation2 + $0x8] sm:$0xff]
        %v312 = vld [vmem:[#allocation2 + $0x10] sm:$0xff]
        %v313 = vld [vmem:[#allocation2 + $0x18] sm:$0xff]
        %v314 = vld [vmem:[#allocation2 + $0x20] sm:$0xff]
        %v315 = vld [vmem:[#allocation2 + $0x28] sm:$0xff]
        %v316 = vld [vmem:[#allocation2 + $0x30] sm:$0xff]
        %v317 = vld [vmem:[#allocation2 + $0x38] sm:$0xff]
        %v318 = vld [vmem:[#allocation2 + $0x40] sm:$0xff]
        %v319 = vld [vmem:[#allocation2 + $0x48] sm:$0xff]
        %v320 = vld [vmem:[#allocation2 + $0x50] sm:$0xff]
        %v321 = vld [vmem:[#allocation2 + $0x58] sm:$0xff]
        %v322 = vld [vmem:[#allocation2 + $0x60] sm:$0xff]
        %v323 = vld [vmem:[#allocation2 + $0x68] sm:$0xff]
        %v324 = vld [vmem:[#allocation2 + $0x70] sm:$0xff]
        %v325 = vld [vmem:[#allocation2 + $0x78] sm:$0xff]
        %v326 = vld [vmem:[#allocation2 + $0x80] sm:$0xff]
        %v327 = vld [vmem:[#allocation2 + $0x88] sm:$0xff]
        %vm328 = vsmask.f32 3328
        %vm329 = vsmask.f32 7440
        %vm330 = vmor %vm328, %vm329
        %v332 = vshrl.u32 %v286, 16
        %v334 = vrot.slane %v332, 4
        %v335 = vshll.u32 %v286, 16
        %v337 = vrot.slane %v335, 5
        %v338 = vor.u32 %v334, %v337
        %v339 = vrot.slane %v338, 4
        %v341 = vshll.u32 %v287, 16
        %v343 = vrot.slane %v341, 5
        %v344 = vsel %vm330, %v339, %v343
        %v345 = vshrl.u32 %v287, 16
        %v347 = vrot.slane %v345, 4
        %v348 = vor.u32 %v347, %v343
        %v349 = vrot.slane %v348, 4
        %v351 = vshll.u32 %v288, 16
        %v353 = vrot.slane %v351, 5
        %v354 = vsel %vm330, %v349, %v353
        %v356 = vshrl.u32 %v289, 16
        %v358 = vrot.slane %v356, 4
        %v359 = vshll.u32 %v289, 16
        %v361 = vrot.slane %v359, 5
        %v362 = vor.u32 %v358, %v361
        %v363 = vrot.slane %v362, 4
        %v365 = vshll.u32 %v290, 16
        %v367 = vrot.slane %v365, 5
        %v368 = vsel %vm330, %v363, %v367
        %v369 = vshrl.u32 %v290, 16
        %v371 = vrot.slane %v369, 4
        %v372 = vor.u32 %v371, %v367
        %v373 = vrot.slane %v372, 4
        %v375 = vshll.u32 %v291, 16
        %v377 = vrot.slane %v375, 5
        %v378 = vsel %vm330, %v373, %v377
        %v380 = vshrl.u32 %v292, 16
        %v382 = vrot.slane %v380, 4
        %v383 = vshll.u32 %v292, 16
        %v385 = vrot.slane %v383, 5
        %v386 = vor.u32 %v382, %v385
        %v387 = vrot.slane %v386, 4
        %v389 = vshll.u32 %v293, 16
        %v391 = vrot.slane %v389, 5
        %v392 = vsel %vm330, %v387, %v391
        %v393 = vshrl.u32 %v293, 16
        %v395 = vrot.slane %v393, 4
        %v396 = vor.u32 %v395, %v391
        %v397 = vrot.slane %v396, 4
        %v399 = vshll.u32 %v294, 16
        %v401 = vrot.slane %v399, 5
        %v402 = vsel %vm330, %v397, %v401
        %v404 = vshrl.u32 %v295, 16
        %v406 = vrot.slane %v404, 4
        %v407 = vshll.u32 %v295, 16
        %v409 = vrot.slane %v407, 5
        %v410 = vor.u32 %v406, %v409
        %v411 = vrot.slane %v410, 4
        %v413 = vshll.u32 %v296, 16
        %v415 = vrot.slane %v413, 5
        %v416 = vsel %vm330, %v411, %v415
        %v417 = vshrl.u32 %v296, 16
        %v419 = vrot.slane %v417, 4
        %v420 = vor.u32 %v419, %v415
        %v421 = vrot.slane %v420, 4
        %v423 = vshll.u32 %v297, 16
        %v425 = vrot.slane %v423, 5
        %v426 = vsel %vm330, %v421, %v425
        %v428 = vshrl.u32 %v298, 16
        %v430 = vrot.slane %v428, 4
        %v431 = vshll.u32 %v298, 16
        %v433 = vrot.slane %v431, 5
        %v434 = vor.u32 %v430, %v433
        %v435 = vrot.slane %v434, 4
        %v437 = vshll.u32 %v299, 16
        %v439 = vrot.slane %v437, 5
        %v440 = vsel %vm330, %v435, %v439
        %v441 = vshrl.u32 %v299, 16
        %v443 = vrot.slane %v441, 4
        %v444 = vor.u32 %v443, %v439
        %v445 = vrot.slane %v444, 4
        %v447 = vshll.u32 %v300, 16
        %v449 = vrot.slane %v447, 5
        %v450 = vsel %vm330, %v445, %v449
        %v452 = vshrl.u32 %v301, 16
        %v454 = vrot.slane %v452, 4
        %v455 = vshll.u32 %v301, 16
        %v457 = vrot.slane %v455, 5
        %v458 = vor.u32 %v454, %v457
        %v459 = vrot.slane %v458, 4
        %v461 = vshll.u32 %v302, 16
        %v463 = vrot.slane %v461, 5
        %v464 = vsel %vm330, %v459, %v463
        %v465 = vshrl.u32 %v302, 16
        %v467 = vrot.slane %v465, 4
        %v468 = vor.u32 %v467, %v463
        %v469 = vrot.slane %v468, 4
        %v471 = vshll.u32 %v303, 16
        %v473 = vrot.slane %v471, 5
        %v474 = vsel %vm330, %v469, %v473
        %v476 = vshrl.u32 %v304, 16
        %v478 = vrot.slane %v476, 4
        %v479 = vshll.u32 %v304, 16
        %v481 = vrot.slane %v479, 5
        %v482 = vor.u32 %v478, %v481
        %v483 = vrot.slane %v482, 4
        %v485 = vshll.u32 %v305, 16
        %v487 = vrot.slane %v485, 5
        %v488 = vsel %vm330, %v483, %v487
        %v489 = vshrl.u32 %v305, 16
        %v491 = vrot.slane %v489, 4
        %v492 = vor.u32 %v491, %v487
        %v493 = vrot.slane %v492, 4
        %v495 = vshll.u32 %v306, 16
        %v497 = vrot.slane %v495, 5
        %v498 = vsel %vm330, %v493, %v497
        %v500 = vshrl.u32 %v307, 16
        %v502 = vrot.slane %v500, 4
        %v503 = vshll.u32 %v307, 16
        %v505 = vrot.slane %v503, 5
        %v506 = vor.u32 %v502, %v505
        %v507 = vrot.slane %v506, 4
        %v509 = vshll.u32 %v308, 16
        %v511 = vrot.slane %v509, 5
        %v512 = vsel %vm330, %v507, %v511
        %v513 = vshrl.u32 %v308, 16
        %v515 = vrot.slane %v513, 4
        %v516 = vor.u32 %v515, %v511
        %v517 = vrot.slane %v516, 4
        %v519 = vshll.u32 %v309, 16
        %v521 = vrot.slane %v519, 5
        %v522 = vsel %vm330, %v517, %v521
        %s523 = scalar_lea.vmem [#allocation2], 144
        %v524 = vld [vmem:[%s523] sm:$0xff]
        %v525 = vld [vmem:[%s523 + $0x8] sm:$0xff]
        %v526 = vld [vmem:[%s523 + $0x10] sm:$0xff]
        %v527 = vld [vmem:[%s523 + $0x18] sm:$0xff]
        %v528 = vld [vmem:[%s523 + $0x20] sm:$0xff]
        %v529 = vld [vmem:[%s523 + $0x28] sm:$0xff]
        %v530 = vld [vmem:[%s523 + $0x30] sm:$0xff]
        %v531 = vld [vmem:[%s523 + $0x38] sm:$0xff]
        %v532 = vld [vmem:[%s523 + $0x40] sm:$0xff]
        %v533 = vld [vmem:[%s523 + $0x48] sm:$0xff]
        %v534 = vld [vmem:[%s523 + $0x50] sm:$0xff]
        %v535 = vld [vmem:[%s523 + $0x58] sm:$0xff]
        %v536 = vld [vmem:[%s523 + $0x60] sm:$0xff]
        %v537 = vld [vmem:[%s523 + $0x68] sm:$0xff]
        %v538 = vld [vmem:[%s523 + $0x70] sm:$0xff]
        %v539 = vld [vmem:[%s523 + $0x78] sm:$0xff]
        %v540 = vld [vmem:[%s523 + $0x80] sm:$0xff]
        %v541 = vld [vmem:[%s523 + $0x88] sm:$0xff]
        %v542 = vunpack.c.l.b16 %v344
        %v543 = vunpack.c.l.b16 %v354
        %v544 = vunpack.c.l.b16 %v368
        %v545 = vunpack.c.l.b16 %v378
        %v546 = vunpack.c.l.b16 %v392
        %v547 = vunpack.c.l.b16 %v402
        %v548 = vunpack.c.l.b16 %v416
        %v549 = vunpack.c.l.b16 %v426
        %v550 = vunpack.c.l.b16 %v440
        %v551 = vunpack.c.l.b16 %v450
        %v552 = vunpack.c.l.b16 %v464
        %v553 = vunpack.c.l.b16 %v474
        %v554 = vunpack.c.l.b16 %v488
        %v555 = vunpack.c.l.b16 %v498
        %v556 = vunpack.c.l.b16 %v512
        %v557 = vunpack.c.l.b16 %v522
        %v558 = vpack.c.b16 %v543, %v542
        %v559 = vpack.c.b16 %v545, %v544
        %v560 = vpack.c.b16 %v547, %v546
        %v561 = vpack.c.b16 %v549, %v548
        %v562 = vpack.c.b16 %v551, %v550
        %v563 = vpack.c.b16 %v553, %v552
        %v564 = vpack.c.b16 %v555, %v554
        %v565 = vpack.c.b16 %v557, %v556
        %v584 = vunpack.c.l.b16 %v524
        %v585 = vunpack.c.h.b16 %v524
        %v586 = vunpack.c.l.b16 %v525
        %v587 = vunpack.c.h.b16 %v525
        %v588 = vunpack.c.l.b16 %v526
        %v589 = vunpack.c.h.b16 %v526
        %v590 = vunpack.c.l.b16 %v527
        %v591 = vunpack.c.h.b16 %v527
        %v592 = vunpack.c.l.b16 %v528
        %v593 = vunpack.c.h.b16 %v528
        %v594 = vunpack.c.l.b16 %v529
        %v595 = vunpack.c.h.b16 %v529
        %v596 = vunpack.c.l.b16 %v530
        %v597 = vunpack.c.h.b16 %v530
        %v598 = vunpack.c.l.b16 %v531
        %v599 = vunpack.c.h.b16 %v531
        %v600 = vunpack.c.l.b16 %v532
        %v601 = vunpack.c.h.b16 %v532
        %v602 = vunpack.c.l.b16 %v533
        %v603 = vunpack.c.h.b16 %v533
        %v604 = vunpack.c.l.b16 %v534
        %v605 = vunpack.c.h.b16 %v534
        %v606 = vunpack.c.l.b16 %v535
        %v607 = vunpack.c.h.b16 %v535
        %v608 = vunpack.c.l.b16 %v536
        %v609 = vunpack.c.h.b16 %v536
        %v610 = vunpack.c.l.b16 %v537
        %v611 = vunpack.c.h.b16 %v537
        %v612 = vunpack.c.l.b16 %v538
        %v613 = vunpack.c.h.b16 %v538
        %v614 = vunpack.c.l.b16 %v539
        %v615 = vunpack.c.h.b16 %v539
        %v616 = vunpack.c.l.b16 %v540
        %v617 = vunpack.c.h.b16 %v540
        %v618 = vunpack.c.l.b16 %v541
        %v619 = vunpack.c.h.b16 %v541
        %v620 = vpack.c.b16 %v588, %v584
        %v621 = vpack.c.b16 %v589, %v585
        %v622 = vpack.c.b16 %v590, %v586
        %v623 = vpack.c.b16 %v591, %v587
        %v624 = vpack.c.b16 %v596, %v592
        %v625 = vpack.c.b16 %v597, %v593
        %v626 = vpack.c.b16 %v598, %v594
        %v627 = vpack.c.b16 %v599, %v595
        %v628 = vpack.c.b16 %v604, %v600
        %v629 = vpack.c.b16 %v605, %v601
        %v630 = vpack.c.b16 %v606, %v602
        %v631 = vpack.c.b16 %v607, %v603
        %v632 = vpack.c.b16 %v612, %v608
        %v633 = vpack.c.b16 %v613, %v609
        %v634 = vpack.c.b16 %v614, %v610
        %v635 = vpack.c.b16 %v615, %v611
        %v636 = vpack.c.b16 %v616, %v616
        %v637 = vpack.c.b16 %v617, %v617
        %v638 = vpack.c.b16 %v618, %v618
        %v639 = vpack.c.b16 %v619, %v619
        %vm656 = vcmask 588800
        %v658 = vsel %vm656, %v558, 0
        %v661 = vsel %vm656, %v559, 0
        %v664 = vsel %vm656, %v560, 0
        %v667 = vsel %vm656, %v561, 0
        %v670 = vsel %vm656, %v562, 0
        %v673 = vsel %vm656, %v563, 0
        %v676 = vsel %vm656, %v564, 0
        %v679 = vsel %vm656, %v565, 0
        %vm681 = vcmask 1043456
        %v683 = vsel %vm681, %v636, 0
        %v686 = vsel %vm681, %v637, 0
        %v689 = vsel %vm681, %v638, 0
        %v692 = vsel %vm681, %v639, 0
        %694 = vmatprep.subr.bf16.mxu0 %v621
        %695 = vmatpush1.bf16.msra.mxu0 %v620
        %696 = vmatprep.subr.bf16.mxu0 %v625
        %697 = vmatpush1.bf16.msra.mxu0 %v624
        %698 = vmatprep.subr.bf16.mxu0 %v629
        %699 = vmatpush1.bf16.msra.mxu0 %v628
        %700 = vmatprep.subr.bf16.mxu0 %v633
        %701 = vmatpush1.bf16.msra.mxu0 %v632
        %702 = vmatprep.subr.bf16.mxu0 %v686
        %703 = vmatpush1.bf16.msra.mxu0 %v683
        %704 = vmatprep.subr.bf16.mxu0 0
        %705 = vmatpush1.bf16.msra.mxu0 0
        %706 = vmatprep.subr.bf16.mxu0 0
        %707 = vmatpush1.bf16.msra.mxu0 0
        %708 = vmatprep.subr.bf16.mxu0 0
        %709 = vmatpush1.bf16.msra.mxu0 0
        %710 = vmatprep.subr.bf16.mxu0 0
        %711 = vmatpush1.bf16.msra.mxu0 0
        %712 = vmatprep.subr.bf16.mxu0 0
        %713 = vmatpush1.bf16.msra.mxu0 0
        %714 = vmatprep.subr.bf16.mxu0 0
        %715 = vmatpush1.bf16.msra.mxu0 0
        %716 = vmatprep.subr.bf16.mxu0 0
        %717 = vmatpush1.bf16.msra.mxu0 0
        %718 = vmatprep.subr.bf16.mxu0 0
        %719 = vmatpush1.bf16.msra.mxu0 0
        %720 = vmatprep.subr.bf16.mxu0 0
        %721 = vmatpush1.bf16.msra.mxu0 0
        %722 = vmatprep.subr.bf16.mxu0 0
        %723 = vmatpush1.bf16.msra.mxu0 0
        %724 = vmatprep.subr.bf16.mxu0 0
        %725 = vmatpush1.bf16.msra.mxu0 0
        %726 = vmatprep.mubr.bf16.mxu0 0
        %727 = vmatmul.mubr.bf16.gmra.mrb[0].mxu0 %v658
        %v728 = vpop.f32.mrb[0].mxu0
        %v729 = vadd.f32 0.0, %v728
        %v730 = vpop.f32.mrb[0].mxu0
        %v731 = vadd.f32 0.0, %v730
        %v732 = vpop.f32.mrb[0].mxu0
        %v733 = vadd.f32 0.0, %v732
        %v734 = vpop.f32.mrb[0].mxu0
        %v735 = vadd.f32 0.0, %v734
        %736 = vmatprep.mubr.bf16.mxu0 0
        %737 = vmatmul.mubr.bf16.gmra.mrb[0].mxu0 %v661
        %v738 = vpop.f32.mrb[0].mxu0
        %v739 = vadd.f32 0.0, %v738
        %v740 = vpop.f32.mrb[0].mxu0
        %v741 = vadd.f32 0.0, %v740
        %v742 = vpop.f32.mrb[0].mxu0
        %v743 = vadd.f32 0.0, %v742
        %v744 = vpop.f32.mrb[0].mxu0
        %v745 = vadd.f32 0.0, %v744
        %746 = vmatprep.mubr.bf16.mxu0 0
        %747 = vmatmul.mubr.bf16.gmra.mrb[0].mxu0 %v664
        %v748 = vpop.f32.mrb[0].mxu0
        %v749 = vadd.f32 0.0, %v748
        %v750 = vpop.f32.mrb[0].mxu0
        %v751 = vadd.f32 0.0, %v750
        %v752 = vpop.f32.mrb[0].mxu0
        %v753 = vadd.f32 0.0, %v752
        %v754 = vpop.f32.mrb[0].mxu0
        %v755 = vadd.f32 0.0, %v754
        %756 = vmatprep.mubr.bf16.mxu0 0
        %757 = vmatmul.mubr.bf16.gmra.mrb[0].mxu0 %v667
        %v758 = vpop.f32.mrb[0].mxu0
        %v759 = vadd.f32 0.0, %v758
        %v760 = vpop.f32.mrb[0].mxu0
        %v761 = vadd.f32 0.0, %v760
        %v762 = vpop.f32.mrb[0].mxu0
        %v763 = vadd.f32 0.0, %v762
        %v764 = vpop.f32.mrb[0].mxu0
        %v765 = vadd.f32 0.0, %v764
        %766 = vmatprep.mubr.bf16.mxu0 0
        %767 = vmatmul.mubr.bf16.gmra.mrb[0].mxu0 %v670
        %v768 = vpop.f32.mrb[0].mxu0
        %v769 = vadd.f32 0.0, %v768
        %v770 = vpop.f32.mrb[0].mxu0
        %v771 = vadd.f32 0.0, %v770
        %v772 = vpop.f32.mrb[0].mxu0
        %v773 = vadd.f32 0.0, %v772
        %v774 = vpop.f32.mrb[0].mxu0
        %v775 = vadd.f32 0.0, %v774
        %776 = vmatprep.mubr.bf16.mxu0 0
        %777 = vmatmul.mubr.bf16.gmra.mrb[0].mxu0 %v673
        %v778 = vpop.f32.mrb[0].mxu0
        %v779 = vadd.f32 0.0, %v778
        %v780 = vpop.f32.mrb[0].mxu0
        %v781 = vadd.f32 0.0, %v780
        %v782 = vpop.f32.mrb[0].mxu0
        %v783 = vadd.f32 0.0, %v782
        %v784 = vpop.f32.mrb[0].mxu0
        %v785 = vadd.f32 0.0, %v784
        %786 = vmatprep.mubr.bf16.mxu0 0
        %787 = vmatmul.mubr.bf16.gmra.mrb[0].mxu0 %v676
        %v788 = vpop.f32.mrb[0].mxu0
        %v789 = vadd.f32 0.0, %v788
        %v790 = vpop.f32.mrb[0].mxu0
        %v791 = vadd.f32 0.0, %v790
        %v792 = vpop.f32.mrb[0].mxu0
        %v793 = vadd.f32 0.0, %v792
        %v794 = vpop.f32.mrb[0].mxu0
        %v795 = vadd.f32 0.0, %v794
        %796 = vmatprep.mubr.bf16.mxu0 0
        %797 = vmatmul.mubr.bf16.gmra.mrb[0].mxu0 %v679
        %v798 = vpop.f32.mrb[0].mxu0
        %v799 = vadd.f32 0.0, %v798
        %v800 = vpop.f32.mrb[0].mxu0
        %v801 = vadd.f32 0.0, %v800
        %v802 = vpop.f32.mrb[0].mxu0
        %v803 = vadd.f32 0.0, %v802
        %v804 = vpop.f32.mrb[0].mxu0
        %v805 = vadd.f32 0.0, %v804
        %806 = vdwg.mxu0
        %807 = vmatprep.subr.bf16.mxu0 %v623
        %808 = vmatpush1.bf16.msra.mxu0 %v622
        %809 = vmatprep.subr.bf16.mxu0 %v627
        %810 = vmatpush1.bf16.msra.mxu0 %v626
        %811 = vmatprep.subr.bf16.mxu0 %v631
        %812 = vmatpush1.bf16.msra.mxu0 %v630
        %813 = vmatprep.subr.bf16.mxu0 %v635
        %814 = vmatpush1.bf16.msra.mxu0 %v634
        %815 = vmatprep.subr.bf16.mxu0 %v692
        %816 = vmatpush1.bf16.msra.mxu0 %v689
        %817 = vmatprep.subr.bf16.mxu0 0
        %818 = vmatpush1.bf16.msra.mxu0 0
        %819 = vmatprep.subr.bf16.mxu0 0
        %820 = vmatpush1.bf16.msra.mxu0 0
        %821 = vmatprep.subr.bf16.mxu0 0
        %822 = vmatpush1.bf16.msra.mxu0 0
        %823 = vmatprep.subr.bf16.mxu0 0
        %824 = vmatpush1.bf16.msra.mxu0 0
        %825 = vmatprep.subr.bf16.mxu0 0
        %826 = vmatpush1.bf16.msra.mxu0 0
        %827 = vmatprep.subr.bf16.mxu0 0
        %828 = vmatpush1.bf16.msra.mxu0 0
        %829 = vmatprep.subr.bf16.mxu0 0
        %830 = vmatpush1.bf16.msra.mxu0 0
        %831 = vmatprep.subr.bf16.mxu0 0
        %832 = vmatpush1.bf16.msra.mxu0 0
        %833 = vmatprep.subr.bf16.mxu0 0
        %834 = vmatpush1.bf16.msra.mxu0 0
        %835 = vmatprep.subr.bf16.mxu0 0
        %836 = vmatpush1.bf16.msra.mxu0 0
        %837 = vmatprep.subr.bf16.mxu0 0
        %838 = vmatpush1.bf16.msra.mxu0 0
        %839 = vmatprep.mubr.bf16.mxu0 0
        %840 = vmatmul.mubr.bf16.gmra.mrb[0].mxu0 %v658
        %v841 = vpop.f32.mrb[0].mxu0
        %v842 = vadd.f32 0.0, %v841
        %v843 = vpop.f32.mrb[0].mxu0
        %v844 = vadd.f32 0.0, %v843
        %v845 = vpop.f32.mrb[0].mxu0
        %v846 = vadd.f32 0.0, %v845
        %v847 = vpop.f32.mrb[0].mxu0
        %v848 = vadd.f32 0.0, %v847
        %849 = vmatprep.mubr.bf16.mxu0 0
        %850 = vmatmul.mubr.bf16.gmra.mrb[0].mxu0 %v661
        %v851 = vpop.f32.mrb[0].mxu0
        %v852 = vadd.f32 0.0, %v851
        %v853 = vpop.f32.mrb[0].mxu0
        %v854 = vadd.f32 0.0, %v853
        %v855 = vpop.f32.mrb[0].mxu0
        %v856 = vadd.f32 0.0, %v855
        %v857 = vpop.f32.mrb[0].mxu0
        %v858 = vadd.f32 0.0, %v857
        %859 = vmatprep.mubr.bf16.mxu0 0
        %860 = vmatmul.mubr.bf16.gmra.mrb[0].mxu0 %v664
        %v861 = vpop.f32.mrb[0].mxu0
        %v862 = vadd.f32 0.0, %v861
        %v863 = vpop.f32.mrb[0].mxu0
        %v864 = vadd.f32 0.0, %v863
        %v865 = vpop.f32.mrb[0].mxu0
        %v866 = vadd.f32 0.0, %v865
        %v867 = vpop.f32.mrb[0].mxu0
        %v868 = vadd.f32 0.0, %v867
        %869 = vmatprep.mubr.bf16.mxu0 0
        %870 = vmatmul.mubr.bf16.gmra.mrb[0].mxu0 %v667
        %v871 = vpop.f32.mrb[0].mxu0
        %v872 = vadd.f32 0.0, %v871
        %v873 = vpop.f32.mrb[0].mxu0
        %v874 = vadd.f32 0.0, %v873
        %v875 = vpop.f32.mrb[0].mxu0
        %v876 = vadd.f32 0.0, %v875
        %v877 = vpop.f32.mrb[0].mxu0
        %v878 = vadd.f32 0.0, %v877
        %879 = vmatprep.mubr.bf16.mxu0 0
        %880 = vmatmul.mubr.bf16.gmra.mrb[0].mxu0 %v670
        %v881 = vpop.f32.mrb[0].mxu0
        %v882 = vadd.f32 0.0, %v881
        %v883 = vpop.f32.mrb[0].mxu0
        %v884 = vadd.f32 0.0, %v883
        %v885 = vpop.f32.mrb[0].mxu0
        %v886 = vadd.f32 0.0, %v885
        %v887 = vpop.f32.mrb[0].mxu0
        %v888 = vadd.f32 0.0, %v887
        %889 = vmatprep.mubr.bf16.mxu0 0
        %890 = vmatmul.mubr.bf16.gmra.mrb[0].mxu0 %v673
        %v891 = vpop.f32.mrb[0].mxu0
        %v892 = vadd.f32 0.0, %v891
        %v893 = vpop.f32.mrb[0].mxu0
        %v894 = vadd.f32 0.0, %v893
        %v895 = vpop.f32.mrb[0].mxu0
        %v896 = vadd.f32 0.0, %v895
        %v897 = vpop.f32.mrb[0].mxu0
        %v898 = vadd.f32 0.0, %v897
        %899 = vmatprep.mubr.bf16.mxu0 0
        %900 = vmatmul.mubr.bf16.gmra.mrb[0].mxu0 %v676
        %v901 = vpop.f32.mrb[0].mxu0
        %v902 = vadd.f32 0.0, %v901
        %v903 = vpop.f32.mrb[0].mxu0
        %v904 = vadd.f32 0.0, %v903
        %v905 = vpop.f32.mrb[0].mxu0
        %v906 = vadd.f32 0.0, %v905
        %v907 = vpop.f32.mrb[0].mxu0
        %v908 = vadd.f32 0.0, %v907
        %909 = vmatprep.mubr.bf16.mxu0 0
        %910 = vmatmul.mubr.bf16.gmra.mrb[0].mxu0 %v679
        %v911 = vpop.f32.mrb[0].mxu0
        %v912 = vadd.f32 0.0, %v911
        %v913 = vpop.f32.mrb[0].mxu0
        %v914 = vadd.f32 0.0, %v913
        %v915 = vpop.f32.mrb[0].mxu0
        %v916 = vadd.f32 0.0, %v915
        %v917 = vpop.f32.mrb[0].mxu0
        %v918 = vadd.f32 0.0, %v917
        %919 = vdwg.mxu0
        %v936 = vunpack.c.l.b16 %v286
        %v937 = vunpack.c.l.b16 %v287
        %v938 = vunpack.c.l.b16 %v289
        %v939 = vunpack.c.l.b16 %v290
        %v940 = vunpack.c.l.b16 %v292
        %v941 = vunpack.c.l.b16 %v293
        %v942 = vunpack.c.l.b16 %v295
        %v943 = vunpack.c.l.b16 %v296
        %v944 = vunpack.c.l.b16 %v298
        %v945 = vunpack.c.l.b16 %v299
        %v946 = vunpack.c.l.b16 %v301
        %v947 = vunpack.c.l.b16 %v302
        %v948 = vunpack.c.l.b16 %v304
        %v949 = vunpack.c.l.b16 %v305
        %v950 = vunpack.c.l.b16 %v307
        %v951 = vunpack.c.l.b16 %v308
        %v952 = vpack.c.b16 %v937, %v936
        %v953 = vpack.c.b16 %v939, %v938
        %v954 = vpack.c.b16 %v941, %v940
        %v955 = vpack.c.b16 %v943, %v942
        %v956 = vpack.c.b16 %v945, %v944
        %v957 = vpack.c.b16 %v947, %v946
        %v958 = vpack.c.b16 %v949, %v948
        %v959 = vpack.c.b16 %v951, %v950
        %v978 = vunpack.c.l.b16 %v310
        %v979 = vunpack.c.h.b16 %v310
        %v980 = vunpack.c.l.b16 %v311
        %v981 = vunpack.c.h.b16 %v311
        %v982 = vunpack.c.l.b16 %v312
        %v983 = vunpack.c.h.b16 %v312
        %v984 = vunpack.c.l.b16 %v313
        %v985 = vunpack.c.h.b16 %v313
        %v986 = vunpack.c.l.b16 %v314
        %v987 = vunpack.c.h.b16 %v314
        %v988 = vunpack.c.l.b16 %v315
        %v989 = vunpack.c.h.b16 %v315
        %v990 = vunpack.c.l.b16 %v316
        %v991 = vunpack.c.h.b16 %v316
        %v992 = vunpack.c.l.b16 %v317
        %v993 = vunpack.c.h.b16 %v317
        %v994 = vunpack.c.l.b16 %v318
        %v995 = vunpack.c.h.b16 %v318
        %v996 = vunpack.c.l.b16 %v319
        %v997 = vunpack.c.h.b16 %v319
        %v998 = vunpack.c.l.b16 %v320
        %v999 = vunpack.c.h.b16 %v320
        %v1000 = vunpack.c.l.b16 %v321
        %v1001 = vunpack.c.h.b16 %v321
        %v1002 = vunpack.c.l.b16 %v322
        %v1003 = vunpack.c.h.b16 %v322
        %v1004 = vunpack.c.l.b16 %v323
        %v1005 = vunpack.c.h.b16 %v323
        %v1006 = vunpack.c.l.b16 %v324
        %v1007 = vunpack.c.h.b16 %v324
        %v1008 = vunpack.c.l.b16 %v325
        %v1009 = vunpack.c.h.b16 %v325
        %v1010 = vunpack.c.l.b16 %v326
        %v1011 = vunpack.c.h.b16 %v326
        %v1012 = vunpack.c.l.b16 %v327
        %v1013 = vunpack.c.h.b16 %v327
        %v1014 = vpack.c.b16 %v982, %v978
        %v1015 = vpack.c.b16 %v983, %v979
        %v1016 = vpack.c.b16 %v984, %v980
        %v1017 = vpack.c.b16 %v985, %v981
        %v1018 = vpack.c.b16 %v990, %v986
        %v1019 = vpack.c.b16 %v991, %v987
        %v1020 = vpack.c.b16 %v992, %v988
        %v1021 = vpack.c.b16 %v993, %v989
        %v1022 = vpack.c.b16 %v998, %v994
        %v1023 = vpack.c.b16 %v999, %v995
        %v1024 = vpack.c.b16 %v1000, %v996
        %v1025 = vpack.c.b16 %v1001, %v997
        %v1026 = vpack.c.b16 %v1006, %v1002
        %v1027 = vpack.c.b16 %v1007, %v1003
        %v1028 = vpack.c.b16 %v1008, %v1004
        %v1029 = vpack.c.b16 %v1009, %v1005
        %v1030 = vpack.c.b16 %v1010, %v1010
        %v1031 = vpack.c.b16 %v1011, %v1011
        %v1032 = vpack.c.b16 %v1012, %v1012
        %v1033 = vpack.c.b16 %v1013, %v1013
        %v1051 = vsel %vm656, %v952, 0
        %v1054 = vsel %vm656, %v953, 0
        %v1057 = vsel %vm656, %v954, 0
        %v1060 = vsel %vm656, %v955, 0
        %v1063 = vsel %vm656, %v956, 0
        %v1066 = vsel %vm656, %v957, 0
        %v1069 = vsel %vm656, %v958, 0
        %v1072 = vsel %vm656, %v959, 0
        %v1075 = vsel %vm681, %v1030, 0
        %v1078 = vsel %vm681, %v1031, 0
        %v1081 = vsel %vm681, %v1032, 0
        %v1084 = vsel %vm681, %v1033, 0
        %1086 = vmatprep.subr.bf16.mxu0 %v1015
        %1087 = vmatpush1.bf16.msra.mxu0 %v1014
        %1088 = vmatprep.subr.bf16.mxu0 %v1019
        %1089 = vmatpush1.bf16.msra.mxu0 %v1018
        %1090 = vmatprep.subr.bf16.mxu0 %v1023
        %1091 = vmatpush1.bf16.msra.mxu0 %v1022
        %1092 = vmatprep.subr.bf16.mxu0 %v1027
        %1093 = vmatpush1.bf16.msra.mxu0 %v1026
        %1094 = vmatprep.subr.bf16.mxu0 %v1078
        %1095 = vmatpush1.bf16.msra.mxu0 %v1075
        %1096 = vmatprep.subr.bf16.mxu0 0
        %1097 = vmatpush1.bf16.msra.mxu0 0
        %1098 = vmatprep.subr.bf16.mxu0 0
        %1099 = vmatpush1.bf16.msra.mxu0 0
        %1100 = vmatprep.subr.bf16.mxu0 0
        %1101 = vmatpush1.bf16.msra.mxu0 0
        %1102 = vmatprep.subr.bf16.mxu0 0
        %1103 = vmatpush1.bf16.msra.mxu0 0
        %1104 = vmatprep.subr.bf16.mxu0 0
        %1105 = vmatpush1.bf16.msra.mxu0 0
        %1106 = vmatprep.subr.bf16.mxu0 0
        %1107 = vmatpush1.bf16.msra.mxu0 0
        %1108 = vmatprep.subr.bf16.mxu0 0
        %1109 = vmatpush1.bf16.msra.mxu0 0
        %1110 = vmatprep.subr.bf16.mxu0 0
        %1111 = vmatpush1.bf16.msra.mxu0 0
        %1112 = vmatprep.subr.bf16.mxu0 0
        %1113 = vmatpush1.bf16.msra.mxu0 0
        %1114 = vmatprep.subr.bf16.mxu0 0
        %1115 = vmatpush1.bf16.msra.mxu0 0
        %1116 = vmatprep.subr.bf16.mxu0 0
        %1117 = vmatpush1.bf16.msra.mxu0 0
        %1118 = vmatprep.mubr.bf16.mxu0 0
        %1119 = vmatmul.mubr.bf16.gmra.mrb[0].mxu0 %v1051
        %v1120 = vpop.f32.mrb[0].mxu0
        %v1121 = vadd.f32 %v729, %v1120
        %v1122 = vpop.f32.mrb[0].mxu0
        %v1123 = vadd.f32 %v731, %v1122
        %v1124 = vpop.f32.mrb[0].mxu0
        %v1125 = vadd.f32 %v733, %v1124
        %v1126 = vpop.f32.mrb[0].mxu0
        %v1127 = vadd.f32 %v735, %v1126
        %1128 = vmatprep.mubr.bf16.mxu0 0
        %1129 = vmatmul.mubr.bf16.gmra.mrb[0].mxu0 %v1054
        %v1130 = vpop.f32.mrb[0].mxu0
        %v1131 = vadd.f32 %v739, %v1130
        %v1132 = vpop.f32.mrb[0].mxu0
        %v1133 = vadd.f32 %v741, %v1132
        %v1134 = vpop.f32.mrb[0].mxu0
        %v1135 = vadd.f32 %v743, %v1134
        %v1136 = vpop.f32.mrb[0].mxu0
        %v1137 = vadd.f32 %v745, %v1136
        %1138 = vmatprep.mubr.bf16.mxu0 0
        %1139 = vmatmul.mubr.bf16.gmra.mrb[0].mxu0 %v1057
        %v1140 = vpop.f32.mrb[0].mxu0
        %v1141 = vadd.f32 %v749, %v1140
        %v1142 = vpop.f32.mrb[0].mxu0
        %v1143 = vadd.f32 %v751, %v1142
        %v1144 = vpop.f32.mrb[0].mxu0
        %v1145 = vadd.f32 %v753, %v1144
        %v1146 = vpop.f32.mrb[0].mxu0
        %v1147 = vadd.f32 %v755, %v1146
        %1148 = vmatprep.mubr.bf16.mxu0 0
        %1149 = vmatmul.mubr.bf16.gmra.mrb[0].mxu0 %v1060
        %v1150 = vpop.f32.mrb[0].mxu0
        %v1151 = vadd.f32 %v759, %v1150
        %v1152 = vpop.f32.mrb[0].mxu0
        %v1153 = vadd.f32 %v761, %v1152
        %v1154 = vpop.f32.mrb[0].mxu0
        %v1155 = vadd.f32 %v763, %v1154
        %v1156 = vpop.f32.mrb[0].mxu0
        %v1157 = vadd.f32 %v765, %v1156
        %1158 = vmatprep.mubr.bf16.mxu0 0
        %1159 = vmatmul.mubr.bf16.gmra.mrb[0].mxu0 %v1063
        %v1160 = vpop.f32.mrb[0].mxu0
        %v1161 = vadd.f32 %v769, %v1160
        %v1162 = vpop.f32.mrb[0].mxu0
        %v1163 = vadd.f32 %v771, %v1162
        %v1164 = vpop.f32.mrb[0].mxu0
        %v1165 = vadd.f32 %v773, %v1164
        %v1166 = vpop.f32.mrb[0].mxu0
        %v1167 = vadd.f32 %v775, %v1166
        %1168 = vmatprep.mubr.bf16.mxu0 0
        %1169 = vmatmul.mubr.bf16.gmra.mrb[0].mxu0 %v1066
        %v1170 = vpop.f32.mrb[0].mxu0
        %v1171 = vadd.f32 %v779, %v1170
        %v1172 = vpop.f32.mrb[0].mxu0
        %v1173 = vadd.f32 %v781, %v1172
        %v1174 = vpop.f32.mrb[0].mxu0
        %v1175 = vadd.f32 %v783, %v1174
        %v1176 = vpop.f32.mrb[0].mxu0
        %v1177 = vadd.f32 %v785, %v1176
        %1178 = vmatprep.mubr.bf16.mxu0 0
        %1179 = vmatmul.mubr.bf16.gmra.mrb[0].mxu0 %v1069
        %v1180 = vpop.f32.mrb[0].mxu0
        %v1181 = vadd.f32 %v789, %v1180
        %v1182 = vpop.f32.mrb[0].mxu0
        %v1183 = vadd.f32 %v791, %v1182
        %v1184 = vpop.f32.mrb[0].mxu0
        %v1185 = vadd.f32 %v793, %v1184
        %v1186 = vpop.f32.mrb[0].mxu0
        %v1187 = vadd.f32 %v795, %v1186
        %1188 = vmatprep.mubr.bf16.mxu0 0
        %1189 = vmatmul.mubr.bf16.gmra.mrb[0].mxu0 %v1072
        %v1190 = vpop.f32.mrb[0].mxu0
        %v1191 = vadd.f32 %v799, %v1190
        %v1192 = vpop.f32.mrb[0].mxu0
        %v1193 = vadd.f32 %v801, %v1192
        %v1194 = vpop.f32.mrb[0].mxu0
        %v1195 = vadd.f32 %v803, %v1194
        %v1196 = vpop.f32.mrb[0].mxu0
        %v1197 = vadd.f32 %v805, %v1196
        %1198 = vdwg.mxu0
        %1199 = vmatprep.subr.bf16.mxu0 %v1017
        %1200 = vmatpush1.bf16.msra.mxu0 %v1016
        %1201 = vmatprep.subr.bf16.mxu0 %v1021
        %1202 = vmatpush1.bf16.msra.mxu0 %v1020
        %1203 = vmatprep.subr.bf16.mxu0 %v1025
        %1204 = vmatpush1.bf16.msra.mxu0 %v1024
        %1205 = vmatprep.subr.bf16.mxu0 %v1029
        %1206 = vmatpush1.bf16.msra.mxu0 %v1028
        %1207 = vmatprep.subr.bf16.mxu0 %v1084
        %1208 = vmatpush1.bf16.msra.mxu0 %v1081
        %1209 = vmatprep.subr.bf16.mxu0 0
        %1210 = vmatpush1.bf16.msra.mxu0 0
        %1211 = vmatprep.subr.bf16.mxu0 0
        %1212 = vmatpush1.bf16.msra.mxu0 0
        %1213 = vmatprep.subr.bf16.mxu0 0
        %1214 = vmatpush1.bf16.msra.mxu0 0
        %1215 = vmatprep.subr.bf16.mxu0 0
        %1216 = vmatpush1.bf16.msra.mxu0 0
        %1217 = vmatprep.subr.bf16.mxu0 0
        %1218 = vmatpush1.bf16.msra.mxu0 0
        %1219 = vmatprep.subr.bf16.mxu0 0
        %1220 = vmatpush1.bf16.msra.mxu0 0
        %1221 = vmatprep.subr.bf16.mxu0 0
        %1222 = vmatpush1.bf16.msra.mxu0 0
        %1223 = vmatprep.subr.bf16.mxu0 0
        %1224 = vmatpush1.bf16.msra.mxu0 0
        %1225 = vmatprep.subr.bf16.mxu0 0
        %1226 = vmatpush1.bf16.msra.mxu0 0
        %1227 = vmatprep.subr.bf16.mxu0 0
        %1228 = vmatpush1.bf16.msra.mxu0 0
        %1229 = vmatprep.subr.bf16.mxu0 0
        %1230 = vmatpush1.bf16.msra.mxu0 0
        %1231 = vmatprep.mubr.bf16.mxu0 0
        %1232 = vmatmul.mubr.bf16.gmra.mrb[0].mxu0 %v1051
        %v1233 = vpop.f32.mrb[0].mxu0
        %v1234 = vadd.f32 %v842, %v1233
        %v1235 = vpop.f32.mrb[0].mxu0
        %v1236 = vadd.f32 %v844, %v1235
        %v1237 = vpop.f32.mrb[0].mxu0
        %v1238 = vadd.f32 %v846, %v1237
        %v1239 = vpop.f32.mrb[0].mxu0
        %v1240 = vadd.f32 %v848, %v1239
        %1241 = vmatprep.mubr.bf16.mxu0 0
        %1242 = vmatmul.mubr.bf16.gmra.mrb[0].mxu0 %v1054
        %v1243 = vpop.f32.mrb[0].mxu0
        %v1244 = vadd.f32 %v852, %v1243
        %v1245 = vpop.f32.mrb[0].mxu0
        %v1246 = vadd.f32 %v854, %v1245
        %v1247 = vpop.f32.mrb[0].mxu0
        %v1248 = vadd.f32 %v856, %v1247
        %v1249 = vpop.f32.mrb[0].mxu0
        %v1250 = vadd.f32 %v858, %v1249
        %1251 = vmatprep.mubr.bf16.mxu0 0
        %1252 = vmatmul.mubr.bf16.gmra.mrb[0].mxu0 %v1057
        %v1253 = vpop.f32.mrb[0].mxu0
        %v1254 = vadd.f32 %v862, %v1253
        %v1255 = vpop.f32.mrb[0].mxu0
        %v1256 = vadd.f32 %v864, %v1255
        %v1257 = vpop.f32.mrb[0].mxu0
        %v1258 = vadd.f32 %v866, %v1257
        %v1259 = vpop.f32.mrb[0].mxu0
        %v1260 = vadd.f32 %v868, %v1259
        %1261 = vmatprep.mubr.bf16.mxu0 0
        %1262 = vmatmul.mubr.bf16.gmra.mrb[0].mxu0 %v1060
        %v1263 = vpop.f32.mrb[0].mxu0
        %v1264 = vadd.f32 %v872, %v1263
        %v1265 = vpop.f32.mrb[0].mxu0
        %v1266 = vadd.f32 %v874, %v1265
        %v1267 = vpop.f32.mrb[0].mxu0
        %v1268 = vadd.f32 %v876, %v1267
        %v1269 = vpop.f32.mrb[0].mxu0
        %v1270 = vadd.f32 %v878, %v1269
        %1271 = vmatprep.mubr.bf16.mxu0 0
        %1272 = vmatmul.mubr.bf16.gmra.mrb[0].mxu0 %v1063
        %v1273 = vpop.f32.mrb[0].mxu0
        %v1274 = vadd.f32 %v882, %v1273
        %v1275 = vpop.f32.mrb[0].mxu0
        %v1276 = vadd.f32 %v884, %v1275
        %v1277 = vpop.f32.mrb[0].mxu0
        %v1278 = vadd.f32 %v886, %v1277
        %v1279 = vpop.f32.mrb[0].mxu0
        %v1280 = vadd.f32 %v888, %v1279
        %1281 = vmatprep.mubr.bf16.mxu0 0
        %1282 = vmatmul.mubr.bf16.gmra.mrb[0].mxu0 %v1066
        %v1283 = vpop.f32.mrb[0].mxu0
        %v1284 = vadd.f32 %v892, %v1283
        %v1285 = vpop.f32.mrb[0].mxu0
        %v1286 = vadd.f32 %v894, %v1285
        %v1287 = vpop.f32.mrb[0].mxu0
        %v1288 = vadd.f32 %v896, %v1287
        %v1289 = vpop.f32.mrb[0].mxu0
        %v1290 = vadd.f32 %v898, %v1289
        %1291 = vmatprep.mubr.bf16.mxu0 0
        %1292 = vmatmul.mubr.bf16.gmra.mrb[0].mxu0 %v1069
        %v1293 = vpop.f32.mrb[0].mxu0
        %v1294 = vadd.f32 %v902, %v1293
        %v1295 = vpop.f32.mrb[0].mxu0
        %v1296 = vadd.f32 %v904, %v1295
        %v1297 = vpop.f32.mrb[0].mxu0
        %v1298 = vadd.f32 %v906, %v1297
        %v1299 = vpop.f32.mrb[0].mxu0
        %v1300 = vadd.f32 %v908, %v1299
        %1301 = vmatprep.mubr.bf16.mxu0 0
        %1302 = vmatmul.mubr.bf16.gmra.mrb[0].mxu0 %v1072
        %v1303 = vpop.f32.mrb[0].mxu0
        %v1304 = vadd.f32 %v912, %v1303
        %v1305 = vpop.f32.mrb[0].mxu0
        %v1306 = vadd.f32 %v914, %v1305
        %v1307 = vpop.f32.mrb[0].mxu0
        %v1308 = vadd.f32 %v916, %v1307
        %v1309 = vpop.f32.mrb[0].mxu0
        %v1310 = vadd.f32 %v918, %v1309
        %1311 = vdwg.mxu0
        %vm1320 = vcmask 1042432
        %vm1321 = vcmask 1046532
        %vm1322 = vmor %vm1320, %vm1321
        %v1323 = vrot.slane %v286, 5
        %v1324 = vrot.slane %v1323, 4
        %v1325 = vrot.slane %v287, 5
        %v1326 = vsel %vm1322, %v1324, %v1325
        %v1327 = vrot.slane %v1325, 4
        %v1328 = vrot.slane %v288, 5
        %v1329 = vsel %vm1322, %v1327, %v1328
        %v1330 = vrot.slane %v289, 5
        %v1331 = vrot.slane %v1330, 4
        %v1332 = vrot.slane %v290, 5
        %v1333 = vsel %vm1322, %v1331, %v1332
        %v1334 = vrot.slane %v1332, 4
        %v1335 = vrot.slane %v291, 5
        %v1336 = vsel %vm1322, %v1334, %v1335
        %v1337 = vrot.slane %v292, 5
        %v1338 = vrot.slane %v1337, 4
        %v1339 = vrot.slane %v293, 5
        %v1340 = vsel %vm1322, %v1338, %v1339
        %v1341 = vrot.slane %v1339, 4
        %v1342 = vrot.slane %v294, 5
        %v1343 = vsel %vm1322, %v1341, %v1342
        %v1344 = vrot.slane %v295, 5
        %v1345 = vrot.slane %v1344, 4
        %v1346 = vrot.slane %v296, 5
        %v1347 = vsel %vm1322, %v1345, %v1346
        %v1348 = vrot.slane %v1346, 4
        %v1349 = vrot.slane %v297, 5
        %v1350 = vsel %vm1322, %v1348, %v1349
        %v1351 = vrot.slane %v298, 5
        %v1352 = vrot.slane %v1351, 4
        %v1353 = vrot.slane %v299, 5
        %v1354 = vsel %vm1322, %v1352, %v1353
        %v1355 = vrot.slane %v1353, 4
        %v1356 = vrot.slane %v300, 5
        %v1357 = vsel %vm1322, %v1355, %v1356
        %v1358 = vrot.slane %v301, 5
        %v1359 = vrot.slane %v1358, 4
        %v1360 = vrot.slane %v302, 5
        %v1361 = vsel %vm1322, %v1359, %v1360
        %v1362 = vrot.slane %v1360, 4
        %v1363 = vrot.slane %v303, 5
        %v1364 = vsel %vm1322, %v1362, %v1363
        %v1365 = vrot.slane %v304, 5
        %v1366 = vrot.slane %v1365, 4
        %v1367 = vrot.slane %v305, 5
        %v1368 = vsel %vm1322, %v1366, %v1367
        %v1369 = vrot.slane %v1367, 4
        %v1370 = vrot.slane %v306, 5
        %v1371 = vsel %vm1322, %v1369, %v1370
        %v1372 = vrot.slane %v307, 5
        %v1373 = vrot.slane %v1372, 4
        %v1374 = vrot.slane %v308, 5
        %v1375 = vsel %vm1322, %v1373, %v1374
        %v1376 = vrot.slane %v1374, 4
        %v1377 = vrot.slane %v309, 5
        %v1378 = vsel %vm1322, %v1376, %v1377
        %s1379 = scalar_lea.vmem [#allocation2], 288
        %v1380 = vld [vmem:[%s1379] sm:$0xff]
        %v1381 = vld [vmem:[%s1379 + $0x8] sm:$0xff]
        %v1382 = vld [vmem:[%s1379 + $0x10] sm:$0xff]
        %v1383 = vld [vmem:[%s1379 + $0x18] sm:$0xff]
        %v1384 = vld [vmem:[%s1379 + $0x20] sm:$0xff]
        %v1385 = vld [vmem:[%s1379 + $0x28] sm:$0xff]
        %v1386 = vld [vmem:[%s1379 + $0x30] sm:$0xff]
        %v1387 = vld [vmem:[%s1379 + $0x38] sm:$0xff]
        %v1388 = vld [vmem:[%s1379 + $0x40] sm:$0xff]
        %v1389 = vld [vmem:[%s1379 + $0x48] sm:$0xff]
        %v1390 = vld [vmem:[%s1379 + $0x50] sm:$0xff]
        %v1391 = vld [vmem:[%s1379 + $0x58] sm:$0xff]
        %v1392 = vld [vmem:[%s1379 + $0x60] sm:$0xff]
        %v1393 = vld [vmem:[%s1379 + $0x68] sm:$0xff]
        %v1394 = vld [vmem:[%s1379 + $0x70] sm:$0xff]
        %v1395 = vld [vmem:[%s1379 + $0x78] sm:$0xff]
        %v1396 = vld [vmem:[%s1379 + $0x80] sm:$0xff]
        %v1397 = vld [vmem:[%s1379 + $0x88] sm:$0xff]
        %v1398 = vunpack.c.l.b16 %v1326
        %v1399 = vunpack.c.l.b16 %v1329
        %v1400 = vunpack.c.l.b16 %v1333
        %v1401 = vunpack.c.l.b16 %v1336
        %v1402 = vunpack.c.l.b16 %v1340
        %v1403 = vunpack.c.l.b16 %v1343
        %v1404 = vunpack.c.l.b16 %v1347
        %v1405 = vunpack.c.l.b16 %v1350
        %v1406 = vunpack.c.l.b16 %v1354
        %v1407 = vunpack.c.l.b16 %v1357
        %v1408 = vunpack.c.l.b16 %v1361
        %v1409 = vunpack.c.l.b16 %v1364
        %v1410 = vunpack.c.l.b16 %v1368
        %v1411 = vunpack.c.l.b16 %v1371
        %v1412 = vunpack.c.l.b16 %v1375
        %v1413 = vunpack.c.l.b16 %v1378
        %v1414 = vpack.c.b16 %v1399, %v1398
        %v1415 = vpack.c.b16 %v1401, %v1400
        %v1416 = vpack.c.b16 %v1403, %v1402
        %v1417 = vpack.c.b16 %v1405, %v1404
        %v1418 = vpack.c.b16 %v1407, %v1406
        %v1419 = vpack.c.b16 %v1409, %v1408
        %v1420 = vpack.c.b16 %v1411, %v1410
        %v1421 = vpack.c.b16 %v1413, %v1412
        %v1440 = vunpack.c.l.b16 %v1380
        %v1441 = vunpack.c.h.b16 %v1380
        %v1442 = vunpack.c.l.b16 %v1381
        %v1443 = vunpack.c.h.b16 %v1381
        %v1444 = vunpack.c.l.b16 %v1382
        %v1445 = vunpack.c.h.b16 %v1382
        %v1446 = vunpack.c.l.b16 %v1383
        %v1447 = vunpack.c.h.b16 %v1383
        %v1448 = vunpack.c.l.b16 %v1384
        %v1449 = vunpack.c.h.b16 %v1384
        %v1450 = vunpack.c.l.b16 %v1385
        %v1451 = vunpack.c.h.b16 %v1385
        %v1452 = vunpack.c.l.b16 %v1386
        %v1453 = vunpack.c.h.b16 %v1386
        %v1454 = vunpack.c.l.b16 %v1387
        %v1455 = vunpack.c.h.b16 %v1387
        %v1456 = vunpack.c.l.b16 %v1388
        %v1457 = vunpack.c.h.b16 %v1388
        %v1458 = vunpack.c.l.b16 %v1389
        %v1459 = vunpack.c.h.b16 %v1389
        %v1460 = vunpack.c.l.b16 %v1390
        %v1461 = vunpack.c.h.b16 %v1390
        %v1462 = vunpack.c.l.b16 %v1391
        %v1463 = vunpack.c.h.b16 %v1391
        %v1464 = vunpack.c.l.b16 %v1392
        %v1465 = vunpack.c.h.b16 %v1392
        %v1466 = vunpack.c.l.b16 %v1393
        %v1467 = vunpack.c.h.b16 %v1393
        %v1468 = vunpack.c.l.b16 %v1394
        %v1469 = vunpack.c.h.b16 %v1394
        %v1470 = vunpack.c.l.b16 %v1395
        %v1471 = vunpack.c.h.b16 %v1395
        %v1472 = vunpack.c.l.b16 %v1396
        %v1473 = vunpack.c.h.b16 %v1396
        %v1474 = vunpack.c.l.b16 %v1397
        %v1475 = vunpack.c.h.b16 %v1397
        %v1476 = vpack.c.b16 %v1444, %v1440
        %v1477 = vpack.c.b16 %v1445, %v1441
        %v1478 = vpack.c.b16 %v1446, %v1442
        %v1479 = vpack.c.b16 %v1447, %v1443
        %v1480 = vpack.c.b16 %v1452, %v1448
        %v1481 = vpack.c.b16 %v1453, %v1449
        %v1482 = vpack.c.b16 %v1454, %v1450
        %v1483 = vpack.c.b16 %v1455, %v1451
        %v1484 = vpack.c.b16 %v1460, %v1456
        %v1485 = vpack.c.b16 %v1461, %v1457
        %v1486 = vpack.c.b16 %v1462, %v1458
        %v1487 = vpack.c.b16 %v1463, %v1459
        %v1488 = vpack.c.b16 %v1468, %v1464
        %v1489 = vpack.c.b16 %v1469, %v1465
        %v1490 = vpack.c.b16 %v1470, %v1466
        %v1491 = vpack.c.b16 %v1471, %v1467
        %v1492 = vpack.c.b16 %v1472, %v1472
        %v1493 = vpack.c.b16 %v1473, %v1473
        %v1494 = vpack.c.b16 %v1474, %v1474
        %v1495 = vpack.c.b16 %v1475, %v1475
        %v1513 = vsel %vm656, %v1414, 0
        %v1516 = vsel %vm656, %v1415, 0
        %v1519 = vsel %vm656, %v1416, 0
        %v1522 = vsel %vm656, %v1417, 0
        %v1525 = vsel %vm656, %v1418, 0
        %v1528 = vsel %vm656, %v1419, 0
        %v1531 = vsel %vm656, %v1420, 0
        %v1534 = vsel %vm656, %v1421, 0
        %v1537 = vsel %vm681, %v1492, 0
        %v1540 = vsel %vm681, %v1493, 0
        %v1543 = vsel %vm681, %v1494, 0
        %v1546 = vsel %vm681, %v1495, 0
        %1548 = vmatprep.subr.bf16.mxu0 %v1477
        %1549 = vmatpush1.bf16.msra.mxu0 %v1476
        %1550 = vmatprep.subr.bf16.mxu0 %v1481
        %1551 = vmatpush1.bf16.msra.mxu0 %v1480
        %1552 = vmatprep.subr.bf16.mxu0 %v1485
        %1553 = vmatpush1.bf16.msra.mxu0 %v1484
        %1554 = vmatprep.subr.bf16.mxu0 %v1489
        %1555 = vmatpush1.bf16.msra.mxu0 %v1488
        %1556 = vmatprep.subr.bf16.mxu0 %v1540
        %1557 = vmatpush1.bf16.msra.mxu0 %v1537
        %1558 = vmatprep.subr.bf16.mxu0 0
        %1559 = vmatpush1.bf16.msra.mxu0 0
        %1560 = vmatprep.subr.bf16.mxu0 0
        %1561 = vmatpush1.bf16.msra.mxu0 0
        %1562 = vmatprep.subr.bf16.mxu0 0
        %1563 = vmatpush1.bf16.msra.mxu0 0
        %1564 = vmatprep.subr.bf16.mxu0 0
        %1565 = vmatpush1.bf16.msra.mxu0 0
        %1566 = vmatprep.subr.bf16.mxu0 0
        %1567 = vmatpush1.bf16.msra.mxu0 0
        %1568 = vmatprep.subr.bf16.mxu0 0
        %1569 = vmatpush1.bf16.msra.mxu0 0
        %1570 = vmatprep.subr.bf16.mxu0 0
        %1571 = vmatpush1.bf16.msra.mxu0 0
        %1572 = vmatprep.subr.bf16.mxu0 0
        %1573 = vmatpush1.bf16.msra.mxu0 0
        %1574 = vmatprep.subr.bf16.mxu0 0
        %1575 = vmatpush1.bf16.msra.mxu0 0
        %1576 = vmatprep.subr.bf16.mxu0 0
        %1577 = vmatpush1.bf16.msra.mxu0 0
        %1578 = vmatprep.subr.bf16.mxu0 0
        %1579 = vmatpush1.bf16.msra.mxu0 0
        %1580 = vmatprep.mubr.bf16.mxu0 0
        %1581 = vmatmul.mubr.bf16.gmra.mrb[0].mxu0 %v1513
        %v1582 = vpop.f32.mrb[0].mxu0
        %v1583 = vadd.f32 0.0, %v1582
        %v1584 = vpop.f32.mrb[0].mxu0
        %v1585 = vadd.f32 0.0, %v1584
        %v1586 = vpop.f32.mrb[0].mxu0
        %v1587 = vadd.f32 0.0, %v1586
        %v1588 = vpop.f32.mrb[0].mxu0
        %v1589 = vadd.f32 0.0, %v1588
        %1590 = vmatprep.mubr.bf16.mxu0 0
        %1591 = vmatmul.mubr.bf16.gmra.mrb[0].mxu0 %v1516
        %v1592 = vpop.f32.mrb[0].mxu0
        %v1593 = vadd.f32 0.0, %v1592
        %v1594 = vpop.f32.mrb[0].mxu0
        %v1595 = vadd.f32 0.0, %v1594
        %v1596 = vpop.f32.mrb[0].mxu0
        %v1597 = vadd.f32 0.0, %v1596
        %v1598 = vpop.f32.mrb[0].mxu0
        %v1599 = vadd.f32 0.0, %v1598
        %1600 = vmatprep.mubr.bf16.mxu0 0
        %1601 = vmatmul.mubr.bf16.gmra.mrb[0].mxu0 %v1519
        %v1602 = vpop.f32.mrb[0].mxu0
        %v1603 = vadd.f32 0.0, %v1602
        %v1604 = vpop.f32.mrb[0].mxu0
        %v1605 = vadd.f32 0.0, %v1604
        %v1606 = vpop.f32.mrb[0].mxu0
        %v1607 = vadd.f32 0.0, %v1606
        %v1608 = vpop.f32.mrb[0].mxu0
        %v1609 = vadd.f32 0.0, %v1608
        %1610 = vmatprep.mubr.bf16.mxu0 0
        %1611 = vmatmul.mubr.bf16.gmra.mrb[0].mxu0 %v1522
        %v1612 = vpop.f32.mrb[0].mxu0
        %v1613 = vadd.f32 0.0, %v1612
        %v1614 = vpop.f32.mrb[0].mxu0
        %v1615 = vadd.f32 0.0, %v1614
        %v1616 = vpop.f32.mrb[0].mxu0
        %v1617 = vadd.f32 0.0, %v1616
        %v1618 = vpop.f32.mrb[0].mxu0
        %v1619 = vadd.f32 0.0, %v1618
        %1620 = vmatprep.mubr.bf16.mxu0 0
        %1621 = vmatmul.mubr.bf16.gmra.mrb[0].mxu0 %v1525
        %v1622 = vpop.f32.mrb[0].mxu0
        %v1623 = vadd.f32 0.0, %v1622
        %v1624 = vpop.f32.mrb[0].mxu0
        %v1625 = vadd.f32 0.0, %v1624
        %v1626 = vpop.f32.mrb[0].mxu0
        %v1627 = vadd.f32 0.0, %v1626
        %v1628 = vpop.f32.mrb[0].mxu0
        %v1629 = vadd.f32 0.0, %v1628
        %1630 = vmatprep.mubr.bf16.mxu0 0
        %1631 = vmatmul.mubr.bf16.gmra.mrb[0].mxu0 %v1528
        %v1632 = vpop.f32.mrb[0].mxu0
        %v1633 = vadd.f32 0.0, %v1632
        %v1634 = vpop.f32.mrb[0].mxu0
        %v1635 = vadd.f32 0.0, %v1634
        %v1636 = vpop.f32.mrb[0].mxu0
        %v1637 = vadd.f32 0.0, %v1636
        %v1638 = vpop.f32.mrb[0].mxu0
        %v1639 = vadd.f32 0.0, %v1638
        %1640 = vmatprep.mubr.bf16.mxu0 0
        %1641 = vmatmul.mubr.bf16.gmra.mrb[0].mxu0 %v1531
        %v1642 = vpop.f32.mrb[0].mxu0
        %v1643 = vadd.f32 0.0, %v1642
        %v1644 = vpop.f32.mrb[0].mxu0
        %v1645 = vadd.f32 0.0, %v1644
        %v1646 = vpop.f32.mrb[0].mxu0
        %v1647 = vadd.f32 0.0, %v1646
        %v1648 = vpop.f32.mrb[0].mxu0
        %v1649 = vadd.f32 0.0, %v1648
        %1650 = vmatprep.mubr.bf16.mxu0 0
        %1651 = vmatmul.mubr.bf16.gmra.mrb[0].mxu0 %v1534
        %v1652 = vpop.f32.mrb[0].mxu0
        %v1653 = vadd.f32 0.0, %v1652
        %v1654 = vpop.f32.mrb[0].mxu0
        %v1655 = vadd.f32 0.0, %v1654
        %v1656 = vpop.f32.mrb[0].mxu0
        %v1657 = vadd.f32 0.0, %v1656
        %v1658 = vpop.f32.mrb[0].mxu0
        %v1659 = vadd.f32 0.0, %v1658
        %1660 = vdwg.mxu0
        %1661 = vmatprep.subr.bf16.mxu0 %v1479
        %1662 = vmatpush1.bf16.msra.mxu0 %v1478
        %1663 = vmatprep.subr.bf16.mxu0 %v1483
        %1664 = vmatpush1.bf16.msra.mxu0 %v1482
        %1665 = vmatprep.subr.bf16.mxu0 %v1487
        %1666 = vmatpush1.bf16.msra.mxu0 %v1486
        %1667 = vmatprep.subr.bf16.mxu0 %v1491
        %1668 = vmatpush1.bf16.msra.mxu0 %v1490
        %1669 = vmatprep.subr.bf16.mxu0 %v1546
        %1670 = vmatpush1.bf16.msra.mxu0 %v1543
        %1671 = vmatprep.subr.bf16.mxu0 0
        %1672 = vmatpush1.bf16.msra.mxu0 0
        %1673 = vmatprep.subr.bf16.mxu0 0
        %1674 = vmatpush1.bf16.msra.mxu0 0
        %1675 = vmatprep.subr.bf16.mxu0 0
        %1676 = vmatpush1.bf16.msra.mxu0 0
        %1677 = vmatprep.subr.bf16.mxu0 0
        %1678 = vmatpush1.bf16.msra.mxu0 0
        %1679 = vmatprep.subr.bf16.mxu0 0
        %1680 = vmatpush1.bf16.msra.mxu0 0
        %1681 = vmatprep.subr.bf16.mxu0 0
        %1682 = vmatpush1.bf16.msra.mxu0 0
        %1683 = vmatprep.subr.bf16.mxu0 0
        %1684 = vmatpush1.bf16.msra.mxu0 0
        %1685 = vmatprep.subr.bf16.mxu0 0
        %1686 = vmatpush1.bf16.msra.mxu0 0
        %1687 = vmatprep.subr.bf16.mxu0 0
        %1688 = vmatpush1.bf16.msra.mxu0 0
        %1689 = vmatprep.subr.bf16.mxu0 0
        %1690 = vmatpush1.bf16.msra.mxu0 0
        %1691 = vmatprep.subr.bf16.mxu0 0
        %1692 = vmatpush1.bf16.msra.mxu0 0
        %1693 = vmatprep.mubr.bf16.mxu0 0
        %1694 = vmatmul.mubr.bf16.gmra.mrb[0].mxu0 %v1513
        %v1695 = vpop.f32.mrb[0].mxu0
        %v1696 = vadd.f32 0.0, %v1695
        %v1697 = vpop.f32.mrb[0].mxu0
        %v1698 = vadd.f32 0.0, %v1697
        %v1699 = vpop.f32.mrb[0].mxu0
        %v1700 = vadd.f32 0.0, %v1699
        %v1701 = vpop.f32.mrb[0].mxu0
        %v1702 = vadd.f32 0.0, %v1701
        %1703 = vmatprep.mubr.bf16.mxu0 0
        %1704 = vmatmul.mubr.bf16.gmra.mrb[0].mxu0 %v1516
        %v1705 = vpop.f32.mrb[0].mxu0
        %v1706 = vadd.f32 0.0, %v1705
        %v1707 = vpop.f32.mrb[0].mxu0
        %v1708 = vadd.f32 0.0, %v1707
        %v1709 = vpop.f32.mrb[0].mxu0
        %v1710 = vadd.f32 0.0, %v1709
        %v1711 = vpop.f32.mrb[0].mxu0
        %v1712 = vadd.f32 0.0, %v1711
        %1713 = vmatprep.mubr.bf16.mxu0 0
        %1714 = vmatmul.mubr.bf16.gmra.mrb[0].mxu0 %v1519
        %v1715 = vpop.f32.mrb[0].mxu0
        %v1716 = vadd.f32 0.0, %v1715
        %v1717 = vpop.f32.mrb[0].mxu0
        %v1718 = vadd.f32 0.0, %v1717
        %v1719 = vpop.f32.mrb[0].mxu0
        %v1720 = vadd.f32 0.0, %v1719
        %v1721 = vpop.f32.mrb[0].mxu0
        %v1722 = vadd.f32 0.0, %v1721
        %1723 = vmatprep.mubr.bf16.mxu0 0
        %1724 = vmatmul.mubr.bf16.gmra.mrb[0].mxu0 %v1522
        %v1725 = vpop.f32.mrb[0].mxu0
        %v1726 = vadd.f32 0.0, %v1725
        %v1727 = vpop.f32.mrb[0].mxu0
        %v1728 = vadd.f32 0.0, %v1727
        %v1729 = vpop.f32.mrb[0].mxu0
        %v1730 = vadd.f32 0.0, %v1729
        %v1731 = vpop.f32.mrb[0].mxu0
        %v1732 = vadd.f32 0.0, %v1731
        %1733 = vmatprep.mubr.bf16.mxu0 0
        %1734 = vmatmul.mubr.bf16.gmra.mrb[0].mxu0 %v1525
        %v1735 = vpop.f32.mrb[0].mxu0
        %v1736 = vadd.f32 0.0, %v1735
        %v1737 = vpop.f32.mrb[0].mxu0
        %v1738 = vadd.f32 0.0, %v1737
        %v1739 = vpop.f32.mrb[0].mxu0
        %v1740 = vadd.f32 0.0, %v1739
        %v1741 = vpop.f32.mrb[0].mxu0
        %v1742 = vadd.f32 0.0, %v1741
        %1743 = vmatprep.mubr.bf16.mxu0 0
        %1744 = vmatmul.mubr.bf16.gmra.mrb[0].mxu0 %v1528
        %v1745 = vpop.f32.mrb[0].mxu0
        %v1746 = vadd.f32 0.0, %v1745
        %v1747 = vpop.f32.mrb[0].mxu0
        %v1748 = vadd.f32 0.0, %v1747
        %v1749 = vpop.f32.mrb[0].mxu0
        %v1750 = vadd.f32 0.0, %v1749
        %v1751 = vpop.f32.mrb[0].mxu0
        %v1752 = vadd.f32 0.0, %v1751
        %1753 = vmatprep.mubr.bf16.mxu0 0
        %1754 = vmatmul.mubr.bf16.gmra.mrb[0].mxu0 %v1531
        %v1755 = vpop.f32.mrb[0].mxu0
        %v1756 = vadd.f32 0.0, %v1755
        %v1757 = vpop.f32.mrb[0].mxu0
        %v1758 = vadd.f32 0.0, %v1757
        %v1759 = vpop.f32.mrb[0].mxu0
        %v1760 = vadd.f32 0.0, %v1759
        %v1761 = vpop.f32.mrb[0].mxu0
        %v1762 = vadd.f32 0.0, %v1761
        %1763 = vmatprep.mubr.bf16.mxu0 0
        %1764 = vmatmul.mubr.bf16.gmra.mrb[0].mxu0 %v1534
        %v1765 = vpop.f32.mrb[0].mxu0
        %v1766 = vadd.f32 0.0, %v1765
        %v1767 = vpop.f32.mrb[0].mxu0
        %v1768 = vadd.f32 0.0, %v1767
        %v1769 = vpop.f32.mrb[0].mxu0
        %v1770 = vadd.f32 0.0, %v1769
        %v1771 = vpop.f32.mrb[0].mxu0
        %v1772 = vadd.f32 0.0, %v1771
        %1773 = vdwg.mxu0
        %v1774 = vadd.f32 %v1121, %v1583
        %v1775 = vadd.f32 %v1123, %v1585
        %v1776 = vadd.f32 %v1234, %v1696
        %v1777 = vadd.f32 %v1236, %v1698
        %v1778 = vadd.f32 %v1125, %v1587
        %v1779 = vadd.f32 %v1127, %v1589
        %v1780 = vadd.f32 %v1238, %v1700
        %v1781 = vadd.f32 %v1240, %v1702
        %v1782 = vadd.f32 %v1131, %v1593
        %v1783 = vadd.f32 %v1133, %v1595
        %v1784 = vadd.f32 %v1244, %v1706
        %v1785 = vadd.f32 %v1246, %v1708
        %v1786 = vadd.f32 %v1135, %v1597
        %v1787 = vadd.f32 %v1137, %v1599
        %v1788 = vadd.f32 %v1248, %v1710
        %v1789 = vadd.f32 %v1250, %v1712
        %v1790 = vadd.f32 %v1141, %v1603
        %v1791 = vadd.f32 %v1143, %v1605
        %v1792 = vadd.f32 %v1254, %v1716
        %v1793 = vadd.f32 %v1256, %v1718
        %v1794 = vadd.f32 %v1145, %v1607
        %v1795 = vadd.f32 %v1147, %v1609
        %v1796 = vadd.f32 %v1258, %v1720
        %v1797 = vadd.f32 %v1260, %v1722
        %v1798 = vadd.f32 %v1151, %v1613
        %v1799 = vadd.f32 %v1153, %v1615
        %v1800 = vadd.f32 %v1264, %v1726
        %v1801 = vadd.f32 %v1266, %v1728
        %v1802 = vadd.f32 %v1155, %v1617
        %v1803 = vadd.f32 %v1157, %v1619
        %v1804 = vadd.f32 %v1268, %v1730
        %v1805 = vadd.f32 %v1270, %v1732
        %v1806 = vadd.f32 %v1161, %v1623
        %v1807 = vadd.f32 %v1163, %v1625
        %v1808 = vadd.f32 %v1274, %v1736
        %v1809 = vadd.f32 %v1276, %v1738
        %v1810 = vadd.f32 %v1165, %v1627
        %v1811 = vadd.f32 %v1167, %v1629
        %v1812 = vadd.f32 %v1278, %v1740
        %v1813 = vadd.f32 %v1280, %v1742
        %v1814 = vadd.f32 %v1171, %v1633
        %v1815 = vadd.f32 %v1173, %v1635
        %v1816 = vadd.f32 %v1284, %v1746
        %v1817 = vadd.f32 %v1286, %v1748
        %v1818 = vadd.f32 %v1175, %v1637
        %v1819 = vadd.f32 %v1177, %v1639
        %v1820 = vadd.f32 %v1288, %v1750
        %v1821 = vadd.f32 %v1290, %v1752
        %v1822 = vadd.f32 %v1181, %v1643
        %v1823 = vadd.f32 %v1183, %v1645
        %v1824 = vadd.f32 %v1294, %v1756
        %v1825 = vadd.f32 %v1296, %v1758
        %v1826 = vadd.f32 %v1185, %v1647
        %v1827 = vadd.f32 %v1187, %v1649
        %v1828 = vadd.f32 %v1298, %v1760
        %v1829 = vadd.f32 %v1300, %v1762
        %v1830 = vadd.f32 %v1191, %v1653
        %v1831 = vadd.f32 %v1193, %v1655
        %v1832 = vadd.f32 %v1304, %v1766
        %v1833 = vadd.f32 %v1306, %v1768
        %v1834 = vadd.f32 %v1195, %v1657
        %v1835 = vadd.f32 %v1197, %v1659
        %v1836 = vadd.f32 %v1308, %v1770
        %v1837 = vadd.f32 %v1310, %v1772
        %v1838 = vld [vmem:[%s2] sm:$0xf]
        %v1840 = vlaneseq
        %v1841 = vshrl.u32 %v1840, 7
        %v1842 = vsub.s32 0, %v1841
        %v1843 = vrot.slane %v1838, %v1842
        %v1844 = vlaneseq
        %v1845 = vshrl.u32 %v1844, 7
        %v1846 = vsub.s32 1, %v1845
        %v1847 = vrot.slane %v1838, %v1846
        %v1848 = vlaneseq
        %v1849 = vshrl.u32 %v1848, 7
        %v1850 = vsub.s32 2, %v1849
        %v1851 = vrot.slane %v1838, %v1850
        %v1852 = vlaneseq
        %v1853 = vshrl.u32 %v1852, 7
        %v1854 = vsub.s32 3, %v1853
        %v1855 = vrot.slane %v1838, %v1854
        %v1860 = vadd.f32 %v1774, %v1843
        %v1861 = vadd.f32 %v1775, %v1847
        %v1862 = vadd.f32 %v1776, %v1851
        %v1863 = vadd.f32 %v1777, %v1855
        %v1864 = vadd.f32 %v1778, %v1843
        %v1865 = vadd.f32 %v1779, %v1847
        %v1866 = vadd.f32 %v1780, %v1851
        %v1867 = vadd.f32 %v1781, %v1855
        %v1868 = vadd.f32 %v1782, %v1843
        %v1869 = vadd.f32 %v1783, %v1847
        %v1870 = vadd.f32 %v1784, %v1851
        %v1871 = vadd.f32 %v1785, %v1855
        %v1872 = vadd.f32 %v1786, %v1843
        %v1873 = vadd.f32 %v1787, %v1847
        %v1874 = vadd.f32 %v1788, %v1851
        %v1875 = vadd.f32 %v1789, %v1855
        %v1876 = vadd.f32 %v1790, %v1843
        %v1877 = vadd.f32 %v1791, %v1847
        %v1878 = vadd.f32 %v1792, %v1851
        %v1879 = vadd.f32 %v1793, %v1855
        %v1880 = vadd.f32 %v1794, %v1843
        %v1881 = vadd.f32 %v1795, %v1847
        %v1882 = vadd.f32 %v1796, %v1851
        %v1883 = vadd.f32 %v1797, %v1855
        %v1884 = vadd.f32 %v1798, %v1843
        %v1885 = vadd.f32 %v1799, %v1847
        %v1886 = vadd.f32 %v1800, %v1851
        %v1887 = vadd.f32 %v1801, %v1855
        %v1888 = vadd.f32 %v1802, %v1843
        %v1889 = vadd.f32 %v1803, %v1847
        %v1890 = vadd.f32 %v1804, %v1851
        %v1891 = vadd.f32 %v1805, %v1855
        %v1892 = vadd.f32 %v1806, %v1843
        %v1893 = vadd.f32 %v1807, %v1847
        %v1894 = vadd.f32 %v1808, %v1851
        %v1895 = vadd.f32 %v1809, %v1855
        %v1896 = vadd.f32 %v1810, %v1843
        %v1897 = vadd.f32 %v1811, %v1847
        %v1898 = vadd.f32 %v1812, %v1851
        %v1899 = vadd.f32 %v1813, %v1855
        %v1900 = vadd.f32 %v1814, %v1843
        %v1901 = vadd.f32 %v1815, %v1847
        %v1902 = vadd.f32 %v1816, %v1851
        %v1903 = vadd.f32 %v1817, %v1855
        %v1904 = vadd.f32 %v1818, %v1843
        %v1905 = vadd.f32 %v1819, %v1847
        %v1906 = vadd.f32 %v1820, %v1851
        %v1907 = vadd.f32 %v1821, %v1855
        %v1908 = vadd.f32 %v1822, %v1843
        %v1909 = vadd.f32 %v1823, %v1847
        %v1910 = vadd.f32 %v1824, %v1851
        %v1911 = vadd.f32 %v1825, %v1855
        %v1912 = vadd.f32 %v1826, %v1843
        %v1913 = vadd.f32 %v1827, %v1847
        %v1914 = vadd.f32 %v1828, %v1851
        %v1915 = vadd.f32 %v1829, %v1855
        %v1916 = vadd.f32 %v1830, %v1843
        %v1917 = vadd.f32 %v1831, %v1847
        %v1918 = vadd.f32 %v1832, %v1851
        %v1919 = vadd.f32 %v1833, %v1855
        %v1920 = vadd.f32 %v1834, %v1843
        %v1921 = vadd.f32 %v1835, %v1847
        %v1922 = vadd.f32 %v1836, %v1851
        %v1923 = vadd.f32 %v1837, %v1855
        %v1924 = vmax.f32 %v1860, 0.0
        %v1925 = vmax.f32 %v1861, 0.0
        %v1926 = vmax.f32 %v1862, 0.0
        %v1927 = vmax.f32 %v1863, 0.0
        %v1928 = vmax.f32 %v1864, 0.0
        %v1929 = vmax.f32 %v1865, 0.0
        %v1930 = vmax.f32 %v1866, 0.0
        %v1931 = vmax.f32 %v1867, 0.0
        %v1932 = vmax.f32 %v1868, 0.0
        %v1933 = vmax.f32 %v1869, 0.0
        %v1934 = vmax.f32 %v1870, 0.0
        %v1935 = vmax.f32 %v1871, 0.0
        %v1936 = vmax.f32 %v1872, 0.0
        %v1937 = vmax.f32 %v1873, 0.0
        %v1938 = vmax.f32 %v1874, 0.0
        %v1939 = vmax.f32 %v1875, 0.0
        %v1940 = vmax.f32 %v1876, 0.0
        %v1941 = vmax.f32 %v1877, 0.0
        %v1942 = vmax.f32 %v1878, 0.0
        %v1943 = vmax.f32 %v1879, 0.0
        %v1944 = vmax.f32 %v1880, 0.0
        %v1945 = vmax.f32 %v1881, 0.0
        %v1946 = vmax.f32 %v1882, 0.0
        %v1947 = vmax.f32 %v1883, 0.0
        %v1948 = vmax.f32 %v1884, 0.0
        %v1949 = vmax.f32 %v1885, 0.0
        %v1950 = vmax.f32 %v1886, 0.0
        %v1951 = vmax.f32 %v1887, 0.0
        %v1952 = vmax.f32 %v1888, 0.0
        %v1953 = vmax.f32 %v1889, 0.0
        %v1954 = vmax.f32 %v1890, 0.0
        %v1955 = vmax.f32 %v1891, 0.0
        %v1956 = vmax.f32 %v1892, 0.0
        %v1957 = vmax.f32 %v1893, 0.0
        %v1958 = vmax.f32 %v1894, 0.0
        %v1959 = vmax.f32 %v1895, 0.0
        %v1960 = vmax.f32 %v1896, 0.0
        %v1961 = vmax.f32 %v1897, 0.0
        %v1962 = vmax.f32 %v1898, 0.0
        %v1963 = vmax.f32 %v1899, 0.0
        %v1964 = vmax.f32 %v1900, 0.0
        %v1965 = vmax.f32 %v1901, 0.0
        %v1966 = vmax.f32 %v1902, 0.0
        %v1967 = vmax.f32 %v1903, 0.0
        %v1968 = vmax.f32 %v1904, 0.0
        %v1969 = vmax.f32 %v1905, 0.0
        %v1970 = vmax.f32 %v1906, 0.0
        %v1971 = vmax.f32 %v1907, 0.0
        %v1972 = vmax.f32 %v1908, 0.0
        %v1973 = vmax.f32 %v1909, 0.0
        %v1974 = vmax.f32 %v1910, 0.0
        %v1975 = vmax.f32 %v1911, 0.0
        %v1976 = vmax.f32 %v1912, 0.0
        %v1977 = vmax.f32 %v1913, 0.0
        %v1978 = vmax.f32 %v1914, 0.0
        %v1979 = vmax.f32 %v1915, 0.0
        %v1980 = vmax.f32 %v1916, 0.0
        %v1981 = vmax.f32 %v1917, 0.0
        %v1982 = vmax.f32 %v1918, 0.0
        %v1983 = vmax.f32 %v1919, 0.0
        %v1984 = vmax.f32 %v1920, 0.0
        %v1985 = vmax.f32 %v1921, 0.0
        %v1986 = vmax.f32 %v1922, 0.0
        %v1987 = vmax.f32 %v1923, 0.0
        %v1988 = vld [vmem:[%s3] sm:$0xff]
        %1989 = vmatprep.subr.mxu0 %v1925
        %1990 = vmatpush1.msra.mxu0 %v1924
        %1991 = vmatprep.subr.mxu0 %v1929
        %1992 = vmatpush1.msra.mxu0 %v1928
        %1993 = vmatprep.subr.mxu0 %v1933
        %1994 = vmatpush1.msra.mxu0 %v1932
        %1995 = vmatprep.subr.mxu0 %v1937
        %1996 = vmatpush1.msra.mxu0 %v1936
        %1997 = vmatprep.subr.mxu0 %v1941
        %1998 = vmatpush1.msra.mxu0 %v1940
        %1999 = vmatprep.subr.mxu0 %v1945
        %2000 = vmatpush1.msra.mxu0 %v1944
        %2001 = vmatprep.subr.mxu0 %v1949
        %2002 = vmatpush1.msra.mxu0 %v1948
        %2003 = vmatprep.subr.mxu0 %v1953
        %2004 = vmatpush1.msra.mxu0 %v1952
        %2005 = vmatprep.subr.mxu0 %v1957
        %2006 = vmatpush1.msra.mxu0 %v1956
        %2007 = vmatprep.subr.mxu0 %v1961
        %2008 = vmatpush1.msra.mxu0 %v1960
        %2009 = vmatprep.subr.mxu0 %v1965
        %2010 = vmatpush1.msra.mxu0 %v1964
        %2011 = vmatprep.subr.mxu0 %v1969
        %2012 = vmatpush1.msra.mxu0 %v1968
        %2013 = vmatprep.subr.mxu0 %v1973
        %2014 = vmatpush1.msra.mxu0 %v1972
        %2015 = vmatprep.subr.mxu0 %v1977
        %2016 = vmatpush1.msra.mxu0 %v1976
        %2017 = vmatprep.subr.mxu0 %v1981
        %2018 = vmatpush1.msra.mxu0 %v1980
        %2019 = vmatprep.subr.mxu0 %v1985
        %2020 = vmatpush1.msra.mxu0 %v1984
        %2021 = vmatprep.subr.mxu0 0.0
        %2022 = vmatpush1.msra.mxu0 0.0
        %2023 = vmatprep.subr.mxu0 0.0
        %2024 = vmatpush1.msra.mxu0 0.0
        %2025 = vmatprep.subr.mxu0 0.0
        %2026 = vmatpush1.msra.mxu0 0.0
        %2027 = vmatprep.subr.mxu0 0.0
        %2028 = vmatpush1.msra.mxu0 0.0
        %2029 = vmatprep.subr.mxu0 0.0
        %2030 = vmatpush1.msra.mxu0 0.0
        %2031 = vmatprep.subr.mxu0 0.0
        %2032 = vmatpush1.msra.mxu0 0.0
        %2033 = vmatprep.subr.mxu0 0.0
        %2034 = vmatpush1.msra.mxu0 0.0
        %2035 = vmatprep.subr.mxu0 0.0
        %2036 = vmatpush1.msra.mxu0 0.0
        %2037 = vmatprep.subr.mxu0 0.0
        %2038 = vmatpush1.msra.mxu0 0.0
        %2039 = vmatprep.subr.mxu0 0.0
        %2040 = vmatpush1.msra.mxu0 0.0
        %2041 = vmatprep.subr.mxu0 0.0
        %2042 = vmatpush1.msra.mxu0 0.0
        %2043 = vmatprep.subr.mxu0 0.0
        %2044 = vmatpush1.msra.mxu0 0.0
        %2045 = vmatprep.subr.mxu0 0.0
        %2046 = vmatpush1.msra.mxu0 0.0
        %2047 = vmatprep.subr.mxu0 0.0
        %2048 = vmatpush1.msra.mxu0 0.0
        %2049 = vmatprep.subr.mxu0 0.0
        %2050 = vmatpush1.msra.mxu0 0.0
        %2051 = vmatprep.subr.mxu0 0.0
        %2052 = vmatpush1.msra.mxu0 0.0
        %2053 = vmatprep.mubr.f32.mxu0 0.0
        %2054 = vmatmul.mubr.f32.gmra.mrb[0].mxu0 %v1988
        %v2055 = vpop.f32.mrb[0].mxu0
        %v2056 = vadd.f32 0.0, %v2055
        %v2057 = vpop.f32.mrb[0].mxu0
        %v2058 = vadd.f32 0.0, %v2057
        %2059 = vdwg.mxu0
        %2060 = vmatprep.subr.mxu0 %v1927
        %2061 = vmatpush1.msra.mxu0 %v1926
        %2062 = vmatprep.subr.mxu0 %v1931
        %2063 = vmatpush1.msra.mxu0 %v1930
        %2064 = vmatprep.subr.mxu0 %v1935
        %2065 = vmatpush1.msra.mxu0 %v1934
        %2066 = vmatprep.subr.mxu0 %v1939
        %2067 = vmatpush1.msra.mxu0 %v1938
        %2068 = vmatprep.subr.mxu0 %v1943
        %2069 = vmatpush1.msra.mxu0 %v1942
        %2070 = vmatprep.subr.mxu0 %v1947
        %2071 = vmatpush1.msra.mxu0 %v1946
        %2072 = vmatprep.subr.mxu0 %v1951
        %2073 = vmatpush1.msra.mxu0 %v1950
        %2074 = vmatprep.subr.mxu0 %v1955
        %2075 = vmatpush1.msra.mxu0 %v1954
        %2076 = vmatprep.subr.mxu0 %v1959
        %2077 = vmatpush1.msra.mxu0 %v1958
        %2078 = vmatprep.subr.mxu0 %v1963
        %2079 = vmatpush1.msra.mxu0 %v1962
        %2080 = vmatprep.subr.mxu0 %v1967
        %2081 = vmatpush1.msra.mxu0 %v1966
        %2082 = vmatprep.subr.mxu0 %v1971
        %2083 = vmatpush1.msra.mxu0 %v1970
        %2084 = vmatprep.subr.mxu0 %v1975
        %2085 = vmatpush1.msra.mxu0 %v1974
        %2086 = vmatprep.subr.mxu0 %v1979
        %2087 = vmatpush1.msra.mxu0 %v1978
        %2088 = vmatprep.subr.mxu0 %v1983
        %2089 = vmatpush1.msra.mxu0 %v1982
        %2090 = vmatprep.subr.mxu0 %v1987
        %2091 = vmatpush1.msra.mxu0 %v1986
        %2092 = vmatprep.subr.mxu0 0.0
        %2093 = vmatpush1.msra.mxu0 0.0
        %2094 = vmatprep.subr.mxu0 0.0
        %2095 = vmatpush1.msra.mxu0 0.0
        %2096 = vmatprep.subr.mxu0 0.0
        %2097 = vmatpush1.msra.mxu0 0.0
        %2098 = vmatprep.subr.mxu0 0.0
        %2099 = vmatpush1.msra.mxu0 0.0
        %2100 = vmatprep.subr.mxu0 0.0
        %2101 = vmatpush1.msra.mxu0 0.0
        %2102 = vmatprep.subr.mxu0 0.0
        %2103 = vmatpush1.msra.mxu0 0.0
        %2104 = vmatprep.subr.mxu0 0.0
        %2105 = vmatpush1.msra.mxu0 0.0
        %2106 = vmatprep.subr.mxu0 0.0
        %2107 = vmatpush1.msra.mxu0 0.0
        %2108 = vmatprep.subr.mxu0 0.0
        %2109 = vmatpush1.msra.mxu0 0.0
        %2110 = vmatprep.subr.mxu0 0.0
        %2111 = vmatpush1.msra.mxu0 0.0
        %2112 = vmatprep.subr.mxu0 0.0
        %2113 = vmatpush1.msra.mxu0 0.0
        %2114 = vmatprep.subr.mxu0 0.0
        %2115 = vmatpush1.msra.mxu0 0.0
        %2116 = vmatprep.subr.mxu0 0.0
        %2117 = vmatpush1.msra.mxu0 0.0
        %2118 = vmatprep.subr.mxu0 0.0
        %2119 = vmatpush1.msra.mxu0 0.0
        %2120 = vmatprep.subr.mxu0 0.0
        %2121 = vmatpush1.msra.mxu0 0.0
        %2122 = vmatprep.subr.mxu0 0.0
        %2123 = vmatpush1.msra.mxu0 0.0
        %2124 = vmatprep.mubr.f32.mxu0 0.0
        %2125 = vmatmul.mubr.f32.gmra.mrb[0].mxu0 %v1988
        %v2126 = vpop.f32.mrb[0].mxu0
        %v2127 = vadd.f32 0.0, %v2126
        %v2128 = vpop.f32.mrb[0].mxu0
        %v2129 = vadd.f32 0.0, %v2128
        %2130 = vdwg.mxu0
        %v2131 = vld [vmem:[#allocation5] sm:$0xff]
        %v2132 = vld [vmem:[#allocation5 + $0x8] sm:$0xff]
        %v2133 = vld [vmem:[#allocation5 + $0x10] sm:$0xff]
        %v2134 = vld [vmem:[#allocation5 + $0x18] sm:$0xff]
        %v2135 = vld [vmem:[#allocation5 + $0x20] sm:$0xff]
        %v2136 = vld [vmem:[#allocation5 + $0x28] sm:$0xff]
        %v2137 = vld [vmem:[#allocation5 + $0x30] sm:$0xff]
        %v2138 = vld [vmem:[#allocation5 + $0x38] sm:$0xff]
        %v2139 = vld [vmem:[#allocation5 + $0x40] sm:$0xff]
        %v2140 = vld [vmem:[#allocation5 + $0x48] sm:$0xff]
        %v2141 = vld [vmem:[#allocation5 + $0x50] sm:$0xff]
        %v2142 = vld [vmem:[#allocation5 + $0x58] sm:$0xff]
        %v2143 = vld [vmem:[#allocation5 + $0x60] sm:$0xff]
        %v2144 = vld [vmem:[#allocation5 + $0x68] sm:$0xff]
        %v2145 = vld [vmem:[#allocation5 + $0x70] sm:$0xff]
        %v2146 = vld [vmem:[#allocation5 + $0x78] sm:$0xff]
        %v2147 = vld [vmem:[#allocation5 + $0x80] sm:$0xff]
        %v2148 = vld [vmem:[#allocation5 + $0x88] sm:$0xff]
        %v2149 = vld [vmem:[#allocation5 + $0x90] sm:$0xff]
        %v2150 = vld [vmem:[#allocation5 + $0x98] sm:$0xff]
        %v2151 = vld [vmem:[#allocation5 + $0xa0] sm:$0xff]
        %v2152 = vld [vmem:[#allocation5 + $0xa8] sm:$0xff]
        %v2153 = vld [vmem:[#allocation5 + $0xb0] sm:$0xff]
        %v2154 = vld [vmem:[#allocation5 + $0xb8] sm:$0xff]
        %v2155 = vld [vmem:[#allocation5 + $0xc0] sm:$0xff]
        %v2156 = vld [vmem:[#allocation5 + $0xc8] sm:$0xff]
        %v2157 = vld [vmem:[#allocation5 + $0xd0] sm:$0xff]
        %v2158 = vld [vmem:[#allocation5 + $0xd8] sm:$0xff]
        %v2159 = vld [vmem:[#allocation5 + $0xe0] sm:$0xff]
        %v2160 = vld [vmem:[#allocation5 + $0xe8] sm:$0xff]
        %v2161 = vld [vmem:[#allocation5 + $0xf0] sm:$0xff]
        %v2162 = vld [vmem:[#allocation5 + $0xf8] sm:$0xff]
        %v2163 = vld [vmem:[#allocation5 + $0x100] sm:$0xff]
        %v2164 = vld [vmem:[#allocation5 + $0x108] sm:$0xff]
        %v2165 = vld [vmem:[#allocation5 + $0x110] sm:$0xff]
        %v2166 = vld [vmem:[#allocation5 + $0x118] sm:$0xff]
        %v2167 = vld [vmem:[#allocation5 + $0x120] sm:$0xff]
        %v2168 = vld [vmem:[#allocation5 + $0x128] sm:$0xff]
        %v2169 = vld [vmem:[#allocation5 + $0x130] sm:$0xff]
        %v2170 = vld [vmem:[#allocation5 + $0x138] sm:$0xff]
        %v2171 = vld [vmem:[#allocation5 + $0x140] sm:$0xff]
        %v2172 = vld [vmem:[#allocation5 + $0x148] sm:$0xff]
        %v2173 = vld [vmem:[#allocation5 + $0x150] sm:$0xff]
        %v2174 = vld [vmem:[#allocation5 + $0x158] sm:$0xff]
        %v2175 = vld [vmem:[#allocation5 + $0x160] sm:$0xff]
        %v2176 = vld [vmem:[#allocation5 + $0x168] sm:$0xff]
        %v2177 = vld [vmem:[#allocation5 + $0x170] sm:$0xff]
        %v2178 = vld [vmem:[#allocation5 + $0x178] sm:$0xff]
        %v2179 = vld [vmem:[#allocation5 + $0x180] sm:$0xff]
        %v2180 = vld [vmem:[#allocation5 + $0x188] sm:$0xff]
        %v2181 = vld [vmem:[#allocation5 + $0x190] sm:$0xff]
        %v2182 = vld [vmem:[#allocation5 + $0x198] sm:$0xff]
        %v2183 = vld [vmem:[#allocation5 + $0x1a0] sm:$0xff]
        %v2184 = vld [vmem:[#allocation5 + $0x1a8] sm:$0xff]
        %v2185 = vld [vmem:[#allocation5 + $0x1b0] sm:$0xff]
        %v2186 = vld [vmem:[#allocation5 + $0x1b8] sm:$0xff]
        %v2187 = vld [vmem:[#allocation5 + $0x1c0] sm:$0xff]
        %v2188 = vld [vmem:[#allocation5 + $0x1c8] sm:$0xff]
        %v2189 = vld [vmem:[#allocation5 + $0x1d0] sm:$0xff]
        %v2190 = vld [vmem:[#allocation5 + $0x1d8] sm:$0xff]
        %v2191 = vld [vmem:[#allocation5 + $0x1e0] sm:$0xff]
        %v2192 = vld [vmem:[#allocation5 + $0x1e8] sm:$0xff]
        %v2193 = vld [vmem:[#allocation5 + $0x1f0] sm:$0xff]
        %v2194 = vld [vmem:[#allocation5 + $0x1f8] sm:$0xff]
        %v2195 = vld [vmem:[%s5] sm:$0x1]
        %v2197 = vlaneseq
        %v2198 = vshrl.u32 %v2197, 7
        %v2199 = vsub.s32 0, %v2198
        %v2200 = vrot.slane %v2195, %v2199
        %2202 = vmatprep.subr.mxu0 0.0
        %2203 = vmatpush1.msra.mxu0 %v2131
        %2204 = vmatprep.subr.mxu0 0.0
        %2205 = vmatpush1.msra.mxu0 %v2132
        %2206 = vmatprep.subr.mxu0 0.0
        %2207 = vmatpush1.msra.mxu0 %v2133
        %2208 = vmatprep.subr.mxu0 0.0
        %2209 = vmatpush1.msra.mxu0 %v2134
        %2210 = vmatprep.subr.mxu0 0.0
        %2211 = vmatpush1.msra.mxu0 %v2135
        %2212 = vmatprep.subr.mxu0 0.0
        %2213 = vmatpush1.msra.mxu0 %v2136
        %2214 = vmatprep.subr.mxu0 0.0
        %2215 = vmatpush1.msra.mxu0 %v2137
        %2216 = vmatprep.subr.mxu0 0.0
        %2217 = vmatpush1.msra.mxu0 %v2138
        %2218 = vmatprep.subr.mxu0 0.0
        %2219 = vmatpush1.msra.mxu0 %v2139
        %2220 = vmatprep.subr.mxu0 0.0
        %2221 = vmatpush1.msra.mxu0 %v2140
        %2222 = vmatprep.subr.mxu0 0.0
        %2223 = vmatpush1.msra.mxu0 %v2141
        %2224 = vmatprep.subr.mxu0 0.0
        %2225 = vmatpush1.msra.mxu0 %v2142
        %2226 = vmatprep.subr.mxu0 0.0
        %2227 = vmatpush1.msra.mxu0 %v2143
        %2228 = vmatprep.subr.mxu0 0.0
        %2229 = vmatpush1.msra.mxu0 %v2144
        %2230 = vmatprep.subr.mxu0 0.0
        %2231 = vmatpush1.msra.mxu0 %v2145
        %2232 = vmatprep.subr.mxu0 0.0
        %2233 = vmatpush1.msra.mxu0 %v2146
        %2234 = vmatprep.subr.mxu0 0.0
        %2235 = vmatpush1.msra.mxu0 %v2147
        %2236 = vmatprep.subr.mxu0 0.0
        %2237 = vmatpush1.msra.mxu0 %v2148
        %2238 = vmatprep.subr.mxu0 0.0
        %2239 = vmatpush1.msra.mxu0 %v2149
        %2240 = vmatprep.subr.mxu0 0.0
        %2241 = vmatpush1.msra.mxu0 %v2150
        %2242 = vmatprep.subr.mxu0 0.0
        %2243 = vmatpush1.msra.mxu0 %v2151
        %2244 = vmatprep.subr.mxu0 0.0
        %2245 = vmatpush1.msra.mxu0 %v2152
        %2246 = vmatprep.subr.mxu0 0.0
        %2247 = vmatpush1.msra.mxu0 %v2153
        %2248 = vmatprep.subr.mxu0 0.0
        %2249 = vmatpush1.msra.mxu0 %v2154
        %2250 = vmatprep.subr.mxu0 0.0
        %2251 = vmatpush1.msra.mxu0 %v2155
        %2252 = vmatprep.subr.mxu0 0.0
        %2253 = vmatpush1.msra.mxu0 %v2156
        %2254 = vmatprep.subr.mxu0 0.0
        %2255 = vmatpush1.msra.mxu0 %v2157
        %2256 = vmatprep.subr.mxu0 0.0
        %2257 = vmatpush1.msra.mxu0 %v2158
        %2258 = vmatprep.subr.mxu0 0.0
        %2259 = vmatpush1.msra.mxu0 %v2159
        %2260 = vmatprep.subr.mxu0 0.0
        %2261 = vmatpush1.msra.mxu0 %v2160
        %2262 = vmatprep.subr.mxu0 0.0
        %2263 = vmatpush1.msra.mxu0 %v2161
        %2264 = vmatprep.subr.mxu0 0.0
        %2265 = vmatpush1.msra.mxu0 %v2162
        %2266 = vmatprep.mubr.f32.mxu0 %v2058
        %2267 = vmatmul.mubr.f32.gmra.mrb[0].mxu0 %v2056
        %v2268 = vpop.f32.mrb[0].mxu0
        %v2269 = vadd.f32 %v2200, %v2268
        %v2270 = vpop.f32.mrb[0].mxu0
        %2271 = vdwg.mxu0
        %2272 = vmatprep.subr.mxu0 0.0
        %2273 = vmatpush1.msra.mxu0 %v2163
        %2274 = vmatprep.subr.mxu0 0.0
        %2275 = vmatpush1.msra.mxu0 %v2164
        %2276 = vmatprep.subr.mxu0 0.0
        %2277 = vmatpush1.msra.mxu0 %v2165
        %2278 = vmatprep.subr.mxu0 0.0
        %2279 = vmatpush1.msra.mxu0 %v2166
        %2280 = vmatprep.subr.mxu0 0.0
        %2281 = vmatpush1.msra.mxu0 %v2167
        %2282 = vmatprep.subr.mxu0 0.0
        %2283 = vmatpush1.msra.mxu0 %v2168
        %2284 = vmatprep.subr.mxu0 0.0
        %2285 = vmatpush1.msra.mxu0 %v2169
        %2286 = vmatprep.subr.mxu0 0.0
        %2287 = vmatpush1.msra.mxu0 %v2170
        %2288 = vmatprep.subr.mxu0 0.0
        %2289 = vmatpush1.msra.mxu0 %v2171
        %2290 = vmatprep.subr.mxu0 0.0
        %2291 = vmatpush1.msra.mxu0 %v2172
        %2292 = vmatprep.subr.mxu0 0.0
        %2293 = vmatpush1.msra.mxu0 %v2173
        %2294 = vmatprep.subr.mxu0 0.0
        %2295 = vmatpush1.msra.mxu0 %v2174
        %2296 = vmatprep.subr.mxu0 0.0
        %2297 = vmatpush1.msra.mxu0 %v2175
        %2298 = vmatprep.subr.mxu0 0.0
        %2299 = vmatpush1.msra.mxu0 %v2176
        %2300 = vmatprep.subr.mxu0 0.0
        %2301 = vmatpush1.msra.mxu0 %v2177
        %2302 = vmatprep.subr.mxu0 0.0
        %2303 = vmatpush1.msra.mxu0 %v2178
        %2304 = vmatprep.subr.mxu0 0.0
        %2305 = vmatpush1.msra.mxu0 %v2179
        %2306 = vmatprep.subr.mxu0 0.0
        %2307 = vmatpush1.msra.mxu0 %v2180
        %2308 = vmatprep.subr.mxu0 0.0
        %2309 = vmatpush1.msra.mxu0 %v2181
        %2310 = vmatprep.subr.mxu0 0.0
        %2311 = vmatpush1.msra.mxu0 %v2182
        %2312 = vmatprep.subr.mxu0 0.0
        %2313 = vmatpush1.msra.mxu0 %v2183
        %2314 = vmatprep.subr.mxu0 0.0
        %2315 = vmatpush1.msra.mxu0 %v2184
        %2316 = vmatprep.subr.mxu0 0.0
        %2317 = vmatpush1.msra.mxu0 %v2185
        %2318 = vmatprep.subr.mxu0 0.0
        %2319 = vmatpush1.msra.mxu0 %v2186
        %2320 = vmatprep.subr.mxu0 0.0
        %2321 = vmatpush1.msra.mxu0 %v2187
        %2322 = vmatprep.subr.mxu0 0.0
        %2323 = vmatpush1.msra.mxu0 %v2188
        %2324 = vmatprep.subr.mxu0 0.0
        %2325 = vmatpush1.msra.mxu0 %v2189
        %2326 = vmatprep.subr.mxu0 0.0
        %2327 = vmatpush1.msra.mxu0 %v2190
        %2328 = vmatprep.subr.mxu0 0.0
        %2329 = vmatpush1.msra.mxu0 %v2191
        %2330 = vmatprep.subr.mxu0 0.0
        %2331 = vmatpush1.msra.mxu0 %v2192
        %2332 = vmatprep.subr.mxu0 0.0
        %2333 = vmatpush1.msra.mxu0 %v2193
        %2334 = vmatprep.subr.mxu0 0.0
        %2335 = vmatpush1.msra.mxu0 %v2194
        %2336 = vmatprep.mubr.f32.mxu0 %v2129
        %2337 = vmatmul.mubr.f32.gmra.mrb[0].mxu0 %v2127
        %v2338 = vpop.f32.mrb[0].mxu0
        %v2339 = vadd.f32 %v2269, %v2338
        %v2340 = vpop.f32.mrb[0].mxu0
        %2341 = vdwg.mxu0
        %2342 = vst [vmem:[%s277] sm:$0xff] %v2339
        %s2343 = sand.u32 %s161, 1
        %s2344 = scalar_lea.sflag [#allocation4], %s2343
        %s2345 = sand.u32 %s161, 1
        %s2346 = smul.addr %s2345, 8
        %s2347 = scalar_lea.vmem [#allocation7], %s2346
        // Predicated region
        $region53: #{tpu_custom_call.1} parent=43 // pred_check
          %p2348 = pneg %p171
        $region54: #{tpu_custom_call.1} parent=43 // pred_check_branch
          %2350 = sbr.rel (%p2348) target = $region56
        $region55: #{tpu_custom_call.1} parent=43 // pred_region
          %s2352 = ssub.s32 128, 128
          %2353 = vsyncadd %s2344, %s2352
          %s2354 = smul.addr %s22, 128
          %s2355 = scalar_lea.hbm %s6, %s2354
          %s2357 = sshll.u32 %s2347, 4
          %s2358 = int_to_ptr.vmem [resolvable:$true] %s2357
          %2360 = dma.vmem_to_hbm [thread:$0]  %s2358, 128, %s2355, %s2344
        $region56: #{tpu_custom_call.1} parent=43 // pred_fallthru
          _
      $region44: #{tpu_custom_call.1} parent=5 // pred_fallthru
        _
      %p2361 = scmp.le.s32.totalorder 2, %s17
      // Predicated region
      $region57: #{tpu_custom_call.1} parent=5 // pred_check
        %p2362 = pneg %p2361
      $region58: #{tpu_custom_call.1} parent=5 // pred_check_branch
        %2364 = sbr.rel (%p2362) target = $region60
      $region59: #{tpu_custom_call.1} parent=5 // pred_region
        %s2365 = ssub.s32 %s17, 2
        // Predicated region
        $region61: #{tpu_custom_call.1} parent=59 // pred_check
          %p2366 = pneg %p177
        $region62: #{tpu_custom_call.1} parent=59 // pred_check_branch
          %2368 = sbr.rel (%p2366) target = $region64
        $region63: #{tpu_custom_call.1} parent=59 // pred_region
          %s2369 = sand.u32 %s162, 1
          %s2370 = scalar_lea.sflag [#allocation4], %s2369
          %s2371 = sand.u32 %s162, 1
          %s2372 = smul.addr %s2371, 8
          %s2373 = scalar_lea.vmem [#allocation7], %s2372
          %2374 = dma.done %s2370, 128
        $region64: #{tpu_custom_call.1} parent=59 // pred_fallthru
          _
      $region60: #{tpu_custom_call.1} parent=5 // pred_fallthru
        _
    $region6: #{tpu_custom_call.1} parent=1 // loop_footer
      %s21 = sadd.s32 1, %s17
    $region7: #{tpu_custom_call.1} parent=1 // loop_footer_branch
      %16 = sbr.rel target = $region3
    $region8: #{tpu_custom_call.1} parent=1 // loop_exit
      _
    %2375 = vsyncpa [#allocation3], 1
    %s2376 = scalar_lea.sflag [#allocation3], 1
    %2377 = vsyncpa %s2376, 1
    %2378 = vsyncpa [#allocation6], 1
    %2379 = vsyncpa [#allocation4], 1
    %s2380 = scalar_lea.sflag [#allocation4], 1
    %2381 = vsyncpa %s2380, 1

</llo_original>
